<compile_context>
chip_gen: v5e
topology: v5e:2x2
jax: 0.10.0
libtpu: 0.0.40
codegen_flags: <defaults>
</compile_context>

<pallas_src>
import functools
import math

import jax
import jax.numpy as jnp
from jax import lax
from jax.experimental import pallas as pl
from jax.experimental.pallas import tpu as pltpu

# ---------------- small synthetic BERT config ----------------
VOCAB = 64
MAX_POS = 32
TYPE_VOCAB = 2
HIDDEN = 32          # args.bert_hidden
N_HEADS = 2
HEAD_DIM = HIDDEN // N_HEADS
INTERMEDIATE = 128   # 4 * hidden
N_LAYERS = 2
LN_EPS = 1e-12
# nn.Dropout(args.dropout) is defined but never applied in forward (and would be
# identity in eval mode anyway) -> omitted.


def _full_spec(shape):
    """Whole-array block (satisfies the (8,128) rule by matching full dims)."""
    nd = len(shape)
    return pl.BlockSpec(shape, lambda i, _nd=nd: (0,) * _nd)


_ARBITRARY_1D = pltpu.CompilerParams(dimension_semantics=("arbitrary",))


def _layernorm(h, g, b, eps):
    mean = jnp.mean(h, axis=-1, keepdims=True)
    c = h - mean
    var = jnp.mean(c * c, axis=-1, keepdims=True)
    return c * lax.rsqrt(var + eps) * g + b


# ---------------- Pallas kernels ----------------
def _layernorm_kernel(x_ref, g_ref, b_ref, o_ref, *, eps):
    o_ref[...] = _layernorm(x_ref[...], g_ref[...], b_ref[...], eps)


def _attn_block_kernel(x_ref, wqkv_ref, bqkv_ref, wo_ref, bo_ref, mask_ref,
                       g_ref, b_ref, o_ref, *, batch, seq, n_heads, head_dim, eps):
    """Fused: QKV proj -> per-head attention -> out proj -> +residual -> LN."""
    hidden = n_heads * head_dim
    scale = 1.0 / math.sqrt(head_dim)

    x = x_ref[...]                                        # [B*S, H] f32
    xb = x.astype(jnp.bfloat16)
    qkv = jnp.dot(xb, wqkv_ref[...],                      # bf16 x bf16 -> f32 acc
                  preferred_element_type=jnp.float32) + bqkv_ref[...]   # [B*S, 3H]
    mask = mask_ref[...]                                  # [B, 1, S] additive f32
    wo = wo_ref[...]                                      # [H, H] bf16
    gamma = g_ref[...]
    beta = b_ref[...]
    bo = bo_ref[...]

    for bi in range(batch):
        r0 = bi * seq
        x_b = x[r0:r0 + seq, :]                           # [S, H]
        m_b = mask[bi]                                    # [1, S]
        attn_b = jnp.zeros((seq, hidden), jnp.float32)
        for hi in range(n_heads):
            c0 = hi * head_dim
            q = qkv[r0:r0 + seq, c0:c0 + head_dim]
            k = qkv[r0:r0 + seq, hidden + c0:hidden + c0 + head_dim]
            v = qkv[r0:r0 + seq, 2 * hidden + c0:2 * hidden + c0 + head_dim]
            # q @ k^T without an explicit transpose (contract last dims).
            s = lax.dot_general(q.astype(jnp.bfloat16), k.astype(jnp.bfloat16),
                                (((1,), (1,)), ((), ())),
                                preferred_element_type=jnp.float32)
            s = s * scale + m_b                           # [S, S]
            s_max = jnp.max(s, axis=-1, keepdims=True)
            p = jnp.exp(s - s_max)
            denom = jnp.sum(p, axis=-1, keepdims=True)
            p = p * pl.reciprocal(denom, approx=True)     # EUP, frees VALU slots
            ctx = jnp.dot(p.astype(jnp.bfloat16), v.astype(jnp.bfloat16),
                          preferred_element_type=jnp.float32)       # [S, dh]
            # per-head slice of the output projection == concat(ctx) @ wo
            attn_b = attn_b + jnp.dot(ctx.astype(jnp.bfloat16),
                                      wo[c0:c0 + head_dim, :],
                                      preferred_element_type=jnp.float32)
        h = x_b + attn_b + bo                             # residual + bias, f32
        o_ref[r0:r0 + seq, :] = _layernorm(h, gamma, beta, eps)


def _ffn_block_kernel(x_ref, w1_ref, b1_ref, w2_ref, b2_ref, g_ref, b_ref, o_ref,
                      *, eps):
    """Fused: Linear -> GELU -> Linear -> +residual -> LN."""
    x = x_ref[...]                                        # [B*S, H] f32
    h1 = jnp.dot(x.astype(jnp.bfloat16), w1_ref[...],
                 preferred_element_type=jnp.float32) + b1_ref[...]
    # TODO(synk): HF BERT uses exact erf-GELU; tanh approximation used here
    # (erf lowering availability on Mosaic varies across versions).
    h1 = jax.nn.gelu(h1, approximate=True)
    h2 = jnp.dot(h1.astype(jnp.bfloat16), w2_ref[...],
                 preferred_element_type=jnp.float32) + b2_ref[...]
    o_ref[...] = _layernorm(x + h2, g_ref[...], b_ref[...], eps)


# ---------------- wrappers calling pallas_call ----------------
def layernorm(x, gamma, beta):
    M, H = x.shape
    kernel = functools.partial(_layernorm_kernel, eps=LN_EPS)
    return pl.pallas_call(
        kernel,
        grid=(1,),
        in_specs=[_full_spec((M, H)), _full_spec((1, H)), _full_spec((1, H))],
        out_specs=_full_spec((M, H)),
        out_shape=jax.ShapeDtypeStruct((M, H), jnp.float32),
        compiler_params=_ARBITRARY_1D,
    )(x, gamma.reshape(1, H), beta.reshape(1, H))


def attn_block(x, wqkv, bqkv, wo, bo, mask, gamma, beta, batch, seq):
    M, H = x.shape
    kernel = functools.partial(_attn_block_kernel, batch=batch, seq=seq,
                               n_heads=N_HEADS, head_dim=HEAD_DIM, eps=LN_EPS)
    return pl.pallas_call(
        kernel,
        grid=(1,),
        in_specs=[_full_spec((M, H)),
                  _full_spec((H, 3 * H)), _full_spec((1, 3 * H)),
                  _full_spec((H, H)), _full_spec((1, H)),
                  _full_spec((batch, 1, seq)),
                  _full_spec((1, H)), _full_spec((1, H))],
        out_specs=_full_spec((M, H)),
        out_shape=jax.ShapeDtypeStruct((M, H), jnp.float32),
        compiler_params=_ARBITRARY_1D,
    )(x, wqkv, bqkv.reshape(1, 3 * H), wo, bo.reshape(1, H), mask,
      gamma.reshape(1, H), beta.reshape(1, H))


def ffn_block(x, w1, b1, w2, b2, gamma, beta):
    M, H = x.shape
    F = w1.shape[1]
    kernel = functools.partial(_ffn_block_kernel, eps=LN_EPS)
    return pl.pallas_call(
        kernel,
        grid=(1,),
        in_specs=[_full_spec((M, H)),
                  _full_spec((H, F)), _full_spec((1, F)),
                  _full_spec((F, H)), _full_spec((1, H)),
                  _full_spec((1, H)), _full_spec((1, H))],
        out_specs=_full_spec((M, H)),
        out_shape=jax.ShapeDtypeStruct((M, H), jnp.float32),
        compiler_params=_ARBITRARY_1D,
    )(x, w1, b1.reshape(1, F), w2, b2.reshape(1, H),
      gamma.reshape(1, H), beta.reshape(1, H))


# ---------------- deterministic parameter init ----------------
def init_params(key):
    def normal(k, shape, std=0.02, dtype=jnp.float32):
        return (std * jax.random.normal(k, shape, dtype=jnp.float32)).astype(dtype)

    keys = iter(jax.random.split(key, 4 + N_LAYERS * 4))
    params = {
        "word_emb": normal(next(keys), (VOCAB, HIDDEN)),
        "pos_emb": normal(next(keys), (MAX_POS, HIDDEN)),
        "type_emb": normal(next(keys), (TYPE_VOCAB, HIDDEN)),
        "emb_ln_g": jnp.ones((HIDDEN,), jnp.float32),
        "emb_ln_b": jnp.zeros((HIDDEN,), jnp.float32),
        # self.l0 = nn.Linear(bert_hidden * 2, 1), weight ~ N(0, 0.02)
        "l0_w": normal(next(keys), (2 * HIDDEN, 1)),
        "l0_b": jnp.zeros((1,), jnp.float32),
        "layers": [],
    }
    for _ in range(N_LAYERS):
        layer = {
            # fused QKV projection weight [H, 3H]; matmul weights stored bf16.
            "wqkv": normal(next(keys), (HIDDEN, 3 * HIDDEN), dtype=jnp.bfloat16),
            "bqkv": jnp.zeros((3 * HIDDEN,), jnp.float32),
            "wo": normal(next(keys), (HIDDEN, HIDDEN), dtype=jnp.bfloat16),
            "bo": jnp.zeros((HIDDEN,), jnp.float32),
            "ln1_g": jnp.ones((HIDDEN,), jnp.float32),
            "ln1_b": jnp.zeros((HIDDEN,), jnp.float32),
            "w1": normal(next(keys), (HIDDEN, INTERMEDIATE), dtype=jnp.bfloat16),
            "b1": jnp.zeros((INTERMEDIATE,), jnp.float32),
            "w2": normal(next(keys), (INTERMEDIATE, HIDDEN), dtype=jnp.bfloat16),
            "b2": jnp.zeros((HIDDEN,), jnp.float32),
            "ln2_g": jnp.ones((HIDDEN,), jnp.float32),
            "ln2_b": jnp.zeros((HIDDEN,), jnp.float32),
        }
        params["layers"].append(layer)
    return params


# ---------------- forward pass (matches BertBaseUncased.forward) ----------------
def bert_base_uncased_forward(params, ids, attention_mask, token_type_ids):
    B, S = ids.shape
    H = HIDDEN

    # --- embeddings (table gather is glue in plain JAX) ---
    emb = (jnp.take(params["word_emb"], ids, axis=0)
           + params["pos_emb"][None, :S, :]
           + jnp.take(params["type_emb"], token_type_ids, axis=0))
    emb2d = emb.reshape(B * S, H).astype(jnp.float32)
    x = layernorm(emb2d, params["emb_ln_g"], params["emb_ln_b"])

    hidden_states = [x]

    # HF-style extended additive attention mask: (1 - mask) * -10000, [B, 1, S].
    ext = ((1.0 - attention_mask.astype(jnp.float32)) * -10000.0)[:, None, :]

    for layer in params["layers"]:
        x = attn_block(x, layer["wqkv"], layer["bqkv"], layer["wo"], layer["bo"],
                       ext, layer["ln1_g"], layer["ln1_b"], B, S)
        x = ffn_block(x, layer["w1"], layer["b1"], layer["w2"], layer["b2"],
                      layer["ln2_g"], layer["ln2_b"])
        hidden_states.append(x)

    # out = cat(hidden[-1], hidden[-2], dim=-1); take [CLS]; linear head.
    h_last = hidden_states[-1].reshape(B, S, H)[:, 0, :]
    h_prev = hidden_states[-2].reshape(B, S, H)[:, 0, :]
    cls = jnp.concatenate([h_last, h_prev], axis=-1)                  # [B, 2H]
    # Tiny [B,2H]x[2H,1] head: plain JAX (a kernel launch would be pure overhead
    # and its lane-width-1 output would be masked partial stores).
    logits = cls @ params["l0_w"] + params["l0_b"]                    # [B, 1]
    return logits


if __name__ == "__main__":
    key = jax.random.PRNGKey(0)
    pkey, ikey = jax.random.split(key, 2)
    params = init_params(pkey)

    B, S = 2, 8
    ids = jax.random.randint(ikey, (B, S), 0, VOCAB, dtype=jnp.int32)
    attention_mask = jnp.array([[1] * S, [1] * (S - 2) + [0] * 2], dtype=jnp.int32)
    token_type_ids = jnp.concatenate(
        [jnp.zeros((B, S // 2), jnp.int32), jnp.ones((B, S - S // 2), jnp.int32)],
        axis=1)

    logits = jax.jit(bert_base_uncased_forward)(params, ids, attention_mask,
                                                token_type_ids)
    logits = jax.block_until_ready(logits)
    assert logits.shape == (B, 1) and logits.dtype == jnp.float32
    print("KERNEL_OK")
</pallas_src>

<mosaic_0001>
module attributes {stable_mosaic.version = 11 : i64} {
  func.func @_layernorm_kernel(%arg0: i32, %arg1: memref<16x32xf32, #tpu.memory_space<vmem>>, %arg2: memref<1x32xf32, #tpu.memory_space<vmem>>, %arg3: memref<1x32xf32, #tpu.memory_space<vmem>>, %arg4: memref<16x32xf32, #tpu.memory_space<vmem>>) attributes {dimension_semantics = [#tpu.dimension_semantics<arbitrary>], iteration_bounds = array<i64: 1>, scalar_prefetch = 0 : i64, scratch_operands = 0 : i64, tpu.core_type = #tpu.core_type<tc>, window_params = [{pipeline_mode = #tpu.pipeline_mode<synchronous>, transform_indices = @transform_0, window_bounds = array<i64: 16, 32>}, {pipeline_mode = #tpu.pipeline_mode<synchronous>, transform_indices = @transform_1, window_bounds = array<i64: 1, 32>}, {pipeline_mode = #tpu.pipeline_mode<synchronous>, transform_indices = @transform_2, window_bounds = array<i64: 1, 32>}, {pipeline_mode = #tpu.pipeline_mode<synchronous>, transform_indices = @transform_3, window_bounds = array<i64: 16, 32>}]} {
    %c0 = arith.constant 0 : index
    %c0_0 = arith.constant 0 : index
    %0 = vector.load %arg1[%c0, %c0_0] : memref<16x32xf32, #tpu.memory_space<vmem>>, vector<16x32xf32>
    %c0_1 = arith.constant 0 : index
    %c0_2 = arith.constant 0 : index
    %1 = vector.load %arg2[%c0_1, %c0_2] : memref<1x32xf32, #tpu.memory_space<vmem>>, vector<1x32xf32>
    %c0_3 = arith.constant 0 : index
    %c0_4 = arith.constant 0 : index
    %2 = vector.load %arg3[%c0_3, %c0_4] : memref<1x32xf32, #tpu.memory_space<vmem>>, vector<1x32xf32>
    %cst = arith.constant dense<0.000000e+00> : vector<16xf32>
    %3 = vector.multi_reduction <add>, %0, %cst [1] : vector<16x32xf32> to vector<16xf32>
    %4 = vector.shape_cast %3 : vector<16xf32> to vector<16x1xf32>
    %cst_5 = arith.constant 3.200000e+01 : f32
    %5 = vector.broadcast %cst_5 : f32 to vector<16x1xf32>
    %6 = arith.divf %4, %5 : vector<16x1xf32>
    %7 = vector.broadcast %6 : vector<16x1xf32> to vector<16x32xf32>
    %8 = arith.subf %0, %7 : vector<16x32xf32>
    %9 = arith.mulf %8, %8 : vector<16x32xf32>
    %cst_6 = arith.constant dense<0.000000e+00> : vector<16xf32>
    %10 = vector.multi_reduction <add>, %9, %cst_6 [1] : vector<16x32xf32> to vector<16xf32>
    %11 = vector.shape_cast %10 : vector<16xf32> to vector<16x1xf32>
    %cst_7 = arith.constant 3.200000e+01 : f32
    %12 = vector.broadcast %cst_7 : f32 to vector<16x1xf32>
    %13 = arith.divf %11, %12 : vector<16x1xf32>
    %cst_8 = arith.constant 9.99999996E-13 : f32
    %14 = vector.broadcast %cst_8 : f32 to vector<16x1xf32>
    %15 = arith.addf %13, %14 : vector<16x1xf32>
    %16 = math.rsqrt %15 : vector<16x1xf32>
    %17 = vector.broadcast %16 : vector<16x1xf32> to vector<16x32xf32>
    %18 = arith.mulf %8, %17 : vector<16x32xf32>
    %19 = vector.broadcast %1 : vector<1x32xf32> to vector<16x32xf32>
    %20 = arith.mulf %18, %19 : vector<16x32xf32>
    %21 = vector.broadcast %2 : vector<1x32xf32> to vector<16x32xf32>
    %22 = arith.addf %20, %21 : vector<16x32xf32>
    %c0_9 = arith.constant 0 : index
    %c0_10 = arith.constant 0 : index
    %23 = vector.load %arg4[%c0_9, %c0_10] : memref<16x32xf32, #tpu.memory_space<vmem>>, vector<16x32xf32>
    tpu.vector_store %arg4[%c0_9, %c0_10], %22 {strides = array<i32>} : memref<16x32xf32, #tpu.memory_space<vmem>>, vector<16x32xf32>,
    return
  }
  func.func @transform_0(%arg0: i32) -> (i32, i32) {
    %c0_i32 = arith.constant 0 : i32
    %c0_i32_0 = arith.constant 0 : i32
    %c0_i32_1 = arith.constant 0 : i32
    return %c0_i32, %c0_i32_0 : i32, i32
  }
  func.func @transform_1(%arg0: i32) -> (i32, i32) {
    %c0_i32 = arith.constant 0 : i32
    %c0_i32_0 = arith.constant 0 : i32
    %c0_i32_1 = arith.constant 0 : i32
    return %c0_i32, %c0_i32_0 : i32, i32
  }
  func.func @transform_2(%arg0: i32) -> (i32, i32) {
    %c0_i32 = arith.constant 0 : i32
    %c0_i32_0 = arith.constant 0 : i32
    %c0_i32_1 = arith.constant 0 : i32
    return %c0_i32, %c0_i32_0 : i32, i32
  }
  func.func @transform_3(%arg0: i32) -> (i32, i32) {
    %c0_i32 = arith.constant 0 : i32
    %c0_i32_0 = arith.constant 0 : i32
    %c0_i32_1 = arith.constant 0 : i32
    return %c0_i32, %c0_i32_0 : i32, i32
  }
}

module attributes {stable_mosaic.version = 11 : i64} {
  func.func @_ffn_block_kernel(%arg0: i32, %arg1: memref<16x32xf32, #tpu.memory_space<vmem>>, %arg2: memref<32x128xbf16, #tpu.memory_space<vmem>>, %arg3: memref<1x128xf32, #tpu.memory_space<vmem>>, %arg4: memref<128x32xbf16, #tpu.memory_space<vmem>>, %arg5: memref<1x32xf32, #tpu.memory_space<vmem>>, %arg6: memref<1x32xf32, #tpu.memory_space<vmem>>, %arg7: memref<1x32xf32, #tpu.memory_space<vmem>>, %arg8: memref<16x32xf32, #tpu.memory_space<vmem>>) attributes {dimension_semantics = [#tpu.dimension_semantics<arbitrary>], iteration_bounds = array<i64: 1>, scalar_prefetch = 0 : i64, scratch_operands = 0 : i64, tpu.core_type = #tpu.core_type<tc>, window_params = [{pipeline_mode = #tpu.pipeline_mode<synchronous>, transform_indices = @transform_0, window_bounds = array<i64: 16, 32>}, {pipeline_mode = #tpu.pipeline_mode<synchronous>, transform_indices = @transform_1, window_bounds = array<i64: 32, 128>}, {pipeline_mode = #tpu.pipeline_mode<synchronous>, transform_indices = @transform_2, window_bounds = array<i64: 1, 128>}, {pipeline_mode = #tpu.pipeline_mode<synchronous>, transform_indices = @transform_3, window_bounds = array<i64: 128, 32>}, {pipeline_mode = #tpu.pipeline_mode<synchronous>, transform_indices = @transform_4, window_bounds = array<i64: 1, 32>}, {pipeline_mode = #tpu.pipeline_mode<synchronous>, transform_indices = @transform_5, window_bounds = array<i64: 1, 32>}, {pipeline_mode = #tpu.pipeline_mode<synchronous>, transform_indices = @transform_6, window_bounds = array<i64: 1, 32>}, {pipeline_mode = #tpu.pipeline_mode<synchronous>, transform_indices = @transform_7, window_bounds = array<i64: 16, 32>}]} {
    %c0 = arith.constant 0 : index
    %c0_0 = arith.constant 0 : index
    %0 = vector.load %arg1[%c0, %c0_0] : memref<16x32xf32, #tpu.memory_space<vmem>>, vector<16x32xf32>
    %1 = arith.truncf %0 : vector<16x32xf32> to vector<16x32xbf16>
    %c0_1 = arith.constant 0 : index
    %c0_2 = arith.constant 0 : index
    %2 = vector.load %arg2[%c0_1, %c0_2] : memref<32x128xbf16, #tpu.memory_space<vmem>>, vector<32x128xbf16>
    %cst = arith.constant dense<0.000000e+00> : vector<16x128xf32>
    %3 = tpu.matmul %1, %2, %cst {dimension_numbers = #tpu.dot_dimension_numbers<[1], [0], [0], [1], [0, 0, 1, 1], [], []>} : vector<16x32xbf16>, vector<32x128xbf16>, vector<16x128xf32> -> vector<16x128xf32>
    %c0_3 = arith.constant 0 : index
    %c0_4 = arith.constant 0 : index
    %4 = vector.load %arg3[%c0_3, %c0_4] : memref<1x128xf32, #tpu.memory_space<vmem>>, vector<1x128xf32>
    %5 = vector.broadcast %4 : vector<1x128xf32> to vector<16x128xf32>
    %6 = arith.addf %3, %5 : vector<16x128xf32>
    %7 = arith.mulf %6, %6 : vector<16x128xf32>
    %8 = arith.mulf %6, %7 : vector<16x128xf32>
    %cst_5 = arith.constant 4.471500e-02 : f32
    %9 = vector.broadcast %cst_5 : f32 to vector<16x128xf32>
    %10 = arith.mulf %9, %8 : vector<16x128xf32>
    %11 = arith.addf %6, %10 : vector<16x128xf32>
    %cst_6 = arith.constant 0.797884583 : f32
    %12 = vector.broadcast %cst_6 : f32 to vector<16x128xf32>
    %13 = arith.mulf %12, %11 : vector<16x128xf32>
    %14 = math.tanh %13 : vector<16x128xf32>
    %cst_7 = arith.constant 1.000000e+00 : f32
    %15 = vector.broadcast %cst_7 : f32 to vector<16x128xf32>
    %16 = arith.addf %15, %14 : vector<16x128xf32>
    %cst_8 = arith.constant 5.000000e-01 : f32
    %17 = vector.broadcast %cst_8 : f32 to vector<16x128xf32>
    %18 = arith.mulf %17, %16 : vector<16x128xf32>
    %19 = arith.mulf %6, %18 : vector<16x128xf32>
    %20 = arith.truncf %19 : vector<16x128xf32> to vector<16x128xbf16>
    %c0_9 = arith.constant 0 : index
    %c0_10 = arith.constant 0 : index
    %21 = vector.load %arg4[%c0_9, %c0_10] : memref<128x32xbf16, #tpu.memory_space<vmem>>, vector<128x32xbf16>
    %cst_11 = arith.constant dense<0.000000e+00> : vector<16x32xf32>
    %22 = tpu.matmul %20, %21, %cst_11 {dimension_numbers = #tpu.dot_dimension_numbers<[1], [0], [0], [1], [0, 0, 1, 1], [], []>} : vector<16x128xbf16>, vector<128x32xbf16>, vector<16x32xf32> -> vector<16x32xf32>
    %c0_12 = arith.constant 0 : index
    %c0_13 = arith.constant 0 : index
    %23 = vector.load %arg5[%c0_12, %c0_13] : memref<1x32xf32, #tpu.memory_space<vmem>>, vector<1x32xf32>
    %24 = vector.broadcast %23 : vector<1x32xf32> to vector<16x32xf32>
    %25 = arith.addf %22, %24 : vector<16x32xf32>
    %26 = arith.addf %0, %25 : vector<16x32xf32>
    %c0_14 = arith.constant 0 : index
    %c0_15 = arith.constant 0 : index
    %27 = vector.load %arg6[%c0_14, %c0_15] : memref<1x32xf32, #tpu.memory_space<vmem>>, vector<1x32xf32>
    %c0_16 = arith.constant 0 : index
    %c0_17 = arith.constant 0 : index
    %28 = vector.load %arg7[%c0_16, %c0_17] : memref<1x32xf32, #tpu.memory_space<vmem>>, vector<1x32xf32>
    %cst_18 = arith.constant dense<0.000000e+00> : vector<16xf32>
    %29 = vector.multi_reduction <add>, %26, %cst_18 [1] : vector<16x32xf32> to vector<16xf32>
    %30 = vector.shape_cast %29 : vector<16xf32> to vector<16x1xf32>
    %cst_19 = arith.constant 3.200000e+01 : f32
    %31 = vector.broadcast %cst_19 : f32 to vector<16x1xf32>
    %32 = arith.divf %30, %31 : vector<16x1xf32>
    %33 = vector.broadcast %32 : vector<16x1xf32> to vector<16x32xf32>
    %34 = arith.subf %26, %33 : vector<16x32xf32>
    %35 = arith.mulf %34, %34 : vector<16x32xf32>
    %cst_20 = arith.constant dense<0.000000e+00> : vector<16xf32>
    %36 = vector.multi_reduction <add>, %35, %cst_20 [1] : vector<16x32xf32> to vector<16xf32>
    %37 = vector.shape_cast %36 : vector<16xf32> to vector<16x1xf32>
    %cst_21 = arith.constant 3.200000e+01 : f32
    %38 = vector.broadcast %cst_21 : f32 to vector<16x1xf32>
    %39 = arith.divf %37, %38 : vector<16x1xf32>
    %cst_22 = arith.constant 9.99999996E-13 : f32
    %40 = vector.broadcast %cst_22 : f32 to vector<16x1xf32>
    %41 = arith.addf %39, %40 : vector<16x1xf32>
    %42 = math.rsqrt %41 : vector<16x1xf32>
    %43 = vector.broadcast %42 : vector<16x1xf32> to vector<16x32xf32>
    %44 = arith.mulf %34, %43 : vector<16x32xf32>
    %45 = vector.broadcast %27 : vector<1x32xf32> to vector<16x32xf32>
    %46 = arith.mulf %44, %45 : vector<16x32xf32>
    %47 = vector.broadcast %28 : vector<1x32xf32> to vector<16x32xf32>
    %48 = arith.addf %46, %47 : vector<16x32xf32>
    %c0_23 = arith.constant 0 : index
    %c0_24 = arith.constant 0 : index
    %49 = vector.load %arg8[%c0_23, %c0_24] : memref<16x32xf32, #tpu.memory_space<vmem>>, vector<16x32xf32>
    tpu.vector_store %arg8[%c0_23, %c0_24], %48 {strides = array<i32>} : memref<16x32xf32, #tpu.memory_space<vmem>>, vector<16x32xf32>,
    return
  }
  func.func @transform_0(%arg0: i32) -> (i32, i32) {
    %c0_i32 = arith.constant 0 : i32
    %c0_i32_0 = arith.constant 0 : i32
    %c0_i32_1 = arith.constant 0 : i32
    return %c0_i32, %c0_i32_0 : i32, i32
  }
  func.func @transform_1(%arg0: i32) -> (i32, i32) {
    %c0_i32 = arith.constant 0 : i32
    %c0_i32_0 = arith.constant 0 : i32
    %c0_i32_1 = arith.constant 0 : i32
    return %c0_i32, %c0_i32_0 : i32, i32
  }
  func.func @transform_2(%arg0: i32) -> (i32, i32) {
    %c0_i32 = arith.constant 0 : i32
    %c0_i32_0 = arith.constant 0 : i32
    %c0_i32_1 = arith.constant 0 : i32
    return %c0_i32, %c0_i32_0 : i32, i32
  }
  func.func @transform_3(%arg0: i32) -> (i32, i32) {
    %c0_i32 = arith.constant 0 : i32
    %c0_i32_0 = arith.constant 0 : i32
    %c0_i32_1 = arith.constant 0 : i32
    return %c0_i32, %c0_i32_0 : i32, i32
  }
  func.func @transform_4(%arg0: i32) -> (i32, i32) {
    %c0_i32 = arith.constant 0 : i32
    %c0_i32_0 = arith.constant 0 : i32
    %c0_i32_1 = arith.constant 0 : i32
    return %c0_i32, %c0_i32_0 : i32, i32
  }
  func.func @transform_5(%arg0: i32) -> (i32, i32) {
    %c0_i32 = arith.constant 0 : i32
    %c0_i32_0 = arith.constant 0 : i32
    %c0_i32_1 = arith.constant 0 : i32
    return %c0_i32, %c0_i32_0 : i32, i32
  }
  func.func @transform_6(%arg0: i32) -> (i32, i32) {
    %c0_i32 = arith.constant 0 : i32
    %c0_i32_0 = arith.constant 0 : i32
    %c0_i32_1 = arith.constant 0 : i32
    return %c0_i32, %c0_i32_0 : i32, i32
  }
  func.func @transform_7(%arg0: i32) -> (i32, i32) {
    %c0_i32 = arith.constant 0 : i32
    %c0_i32_0 = arith.constant 0 : i32
    %c0_i32_1 = arith.constant 0 : i32
    return %c0_i32, %c0_i32_0 : i32, i32
  }
}

module attributes {stable_mosaic.version = 11 : i64} {
  func.func @_attn_block_kernel(%arg0: i32, %arg1: memref<16x32xf32, #tpu.memory_space<vmem>>, %arg2: memref<32x96xbf16, #tpu.memory_space<vmem>>, %arg3: memref<1x96xf32, #tpu.memory_space<vmem>>, %arg4: memref<32x32xbf16, #tpu.memory_space<vmem>>, %arg5: memref<1x32xf32, #tpu.memory_space<vmem>>, %arg6: memref<2x1x8xf32, #tpu.memory_space<vmem>>, %arg7: memref<1x32xf32, #tpu.memory_space<vmem>>, %arg8: memref<1x32xf32, #tpu.memory_space<vmem>>, %arg9: memref<16x32xf32, #tpu.memory_space<vmem>>) attributes {dimension_semantics = [#tpu.dimension_semantics<arbitrary>], iteration_bounds = array<i64: 1>, scalar_prefetch = 0 : i64, scratch_operands = 0 : i64, tpu.core_type = #tpu.core_type<tc>, window_params = [{pipeline_mode = #tpu.pipeline_mode<synchronous>, transform_indices = @transform_0, window_bounds = array<i64: 16, 32>}, {pipeline_mode = #tpu.pipeline_mode<synchronous>, transform_indices = @transform_1, window_bounds = array<i64: 32, 96>}, {pipeline_mode = #tpu.pipeline_mode<synchronous>, transform_indices = @transform_2, window_bounds = array<i64: 1, 96>}, {pipeline_mode = #tpu.pipeline_mode<synchronous>, transform_indices = @transform_3, window_bounds = array<i64: 32, 32>}, {pipeline_mode = #tpu.pipeline_mode<synchronous>, transform_indices = @transform_4, window_bounds = array<i64: 1, 32>}, {pipeline_mode = #tpu.pipeline_mode<synchronous>, transform_indices = @transform_5, window_bounds = array<i64: 2, 1, 8>}, {pipeline_mode = #tpu.pipeline_mode<synchronous>, transform_indices = @transform_6, window_bounds = array<i64: 1, 32>}, {pipeline_mode = #tpu.pipeline_mode<synchronous>, transform_indices = @transform_7, window_bounds = array<i64: 1, 32>}, {pipeline_mode = #tpu.pipeline_mode<synchronous>, transform_indices = @transform_8, window_bounds = array<i64: 16, 32>}]} {
    %c0 = arith.constant 0 : index
    %c0_0 = arith.constant 0 : index
    %0 = vector.load %arg1[%c0, %c0_0] : memref<16x32xf32, #tpu.memory_space<vmem>>, vector<16x32xf32>
    %1 = arith.truncf %0 : vector<16x32xf32> to vector<16x32xbf16>
    %c0_1 = arith.constant 0 : index
    %c0_2 = arith.constant 0 : index
    %2 = vector.load %arg2[%c0_1, %c0_2] : memref<32x96xbf16, #tpu.memory_space<vmem>>, vector<32x96xbf16>
    %cst = arith.constant dense<0.000000e+00> : vector<16x96xf32>
    %3 = tpu.matmul %1, %2, %cst {dimension_numbers = #tpu.dot_dimension_numbers<[1], [0], [0], [1], [0, 0, 1, 1], [], []>} : vector<16x32xbf16>, vector<32x96xbf16>, vector<16x96xf32> -> vector<16x96xf32>
    %c0_3 = arith.constant 0 : index
    %c0_4 = arith.constant 0 : index
    %4 = vector.load %arg3[%c0_3, %c0_4] : memref<1x96xf32, #tpu.memory_space<vmem>>, vector<1x96xf32>
    %5 = vector.broadcast %4 : vector<1x96xf32> to vector<16x96xf32>
    %6 = arith.addf %3, %5 : vector<16x96xf32>
    %c0_5 = arith.constant 0 : index
    %c0_6 = arith.constant 0 : index
    %c0_7 = arith.constant 0 : index
    %7 = vector.load %arg6[%c0_5, %c0_6, %c0_7] : memref<2x1x8xf32, #tpu.memory_space<vmem>>, vector<2x1x8xf32>
    %c0_8 = arith.constant 0 : index
    %c0_9 = arith.constant 0 : index
    %8 = vector.load %arg4[%c0_8, %c0_9] : memref<32x32xbf16, #tpu.memory_space<vmem>>, vector<32x32xbf16>
    %c0_10 = arith.constant 0 : index
    %c0_11 = arith.constant 0 : index
    %9 = vector.load %arg7[%c0_10, %c0_11] : memref<1x32xf32, #tpu.memory_space<vmem>>, vector<1x32xf32>
    %c0_12 = arith.constant 0 : index
    %c0_13 = arith.constant 0 : index
    %10 = vector.load %arg8[%c0_12, %c0_13] : memref<1x32xf32, #tpu.memory_space<vmem>>, vector<1x32xf32>
    %c0_14 = arith.constant 0 : index
    %c0_15 = arith.constant 0 : index
    %11 = vector.load %arg5[%c0_14, %c0_15] : memref<1x32xf32, #tpu.memory_space<vmem>>, vector<1x32xf32>
    %12 = vector.extract_strided_slice %0 {offsets = [0, 0], sizes = [8, 32], strides = [1, 1]} : vector<16x32xf32> to vector<8x32xf32>
    %13 = vector.extract_strided_slice %7 {offsets = [0, 0, 0], sizes = [1, 1, 8], strides = [1, 1, 1]} : vector<2x1x8xf32> to vector<1x1x8xf32>
    %14 = vector.shape_cast %13 : vector<1x1x8xf32> to vector<1x8xf32>
    %cst_16 = arith.constant 0.000000e+00 : f32
    %15 = vector.broadcast %cst_16 : f32 to vector<8x32xf32>
    %16 = vector.extract_strided_slice %6 {offsets = [0, 0], sizes = [8, 16], strides = [1, 1]} : vector<16x96xf32> to vector<8x16xf32>
    %17 = vector.extract_strided_slice %6 {offsets = [0, 32], sizes = [8, 16], strides = [1, 1]} : vector<16x96xf32> to vector<8x16xf32>
    %18 = vector.extract_strided_slice %6 {offsets = [0, 64], sizes = [8, 16], strides = [1, 1]} : vector<16x96xf32> to vector<8x16xf32>
    %19 = arith.truncf %16 : vector<8x16xf32> to vector<8x16xbf16>
    %20 = arith.truncf %17 : vector<8x16xf32> to vector<8x16xbf16>
    %cst_17 = arith.constant dense<0.000000e+00> : vector<8x8xf32>
    %21 = tpu.matmul %19, %20, %cst_17 {dimension_numbers = #tpu.dot_dimension_numbers<[1], [1], [0], [0], [0, 0, 1, 0], [], []>} : vector<8x16xbf16>, vector<8x16xbf16>, vector<8x8xf32> -> vector<8x8xf32>
    %cst_18 = arith.constant 2.500000e-01 : f32
    %22 = vector.broadcast %cst_18 : f32 to vector<8x8xf32>
    %23 = arith.mulf %21, %22 : vector<8x8xf32>
    %24 = vector.broadcast %14 : vector<1x8xf32> to vector<8x8xf32>
    %25 = arith.addf %23, %24 : vector<8x8xf32>
    %cst_19 = arith.constant dense<0xFF800000> : vector<8xf32>
    %26 = vector.multi_reduction <maximumf>, %25, %cst_19 [1] : vector<8x8xf32> to vector<8xf32>
    %27 = vector.shape_cast %26 : vector<8xf32> to vector<8x1xf32>
    %28 = vector.broadcast %27 : vector<8x1xf32> to vector<8x8xf32>
    %29 = arith.subf %25, %28 : vector<8x8xf32>
    %30 = math.exp %29 : vector<8x8xf32>
    %cst_20 = arith.constant dense<0.000000e+00> : vector<8xf32>
    %31 = vector.multi_reduction <add>, %30, %cst_20 [1] : vector<8x8xf32> to vector<8xf32>
    %32 = vector.shape_cast %31 : vector<8xf32> to vector<8x1xf32>
    %33 = tpu.reciprocal %32 {approx = true} : vector<8x1xf32> -> vector<8x1xf32>
    %34 = vector.broadcast %33 : vector<8x1xf32> to vector<8x8xf32>
    %35 = arith.mulf %30, %34 : vector<8x8xf32>
    %36 = arith.truncf %35 : vector<8x8xf32> to vector<8x8xbf16>
    %37 = arith.truncf %18 : vector<8x16xf32> to vector<8x16xbf16>
    %cst_21 = arith.constant dense<0.000000e+00> : vector<8x16xf32>
    %38 = tpu.matmul %36, %37, %cst_21 {dimension_numbers = #tpu.dot_dimension_numbers<[1], [0], [0], [1], [0, 0, 1, 1], [], []>} : vector<8x8xbf16>, vector<8x16xbf16>, vector<8x16xf32> -> vector<8x16xf32>
    %39 = arith.truncf %38 : vector<8x16xf32> to vector<8x16xbf16>
    %40 = vector.extract_strided_slice %8 {offsets = [0, 0], sizes = [16, 32], strides = [1, 1]} : vector<32x32xbf16> to vector<16x32xbf16>
    %cst_22 = arith.constant dense<0.000000e+00> : vector<8x32xf32>
    %41 = tpu.matmul %39, %40, %cst_22 {dimension_numbers = #tpu.dot_dimension_numbers<[1], [0], [0], [1], [0, 0, 1, 1], [], []>} : vector<8x16xbf16>, vector<16x32xbf16>, vector<8x32xf32> -> vector<8x32xf32>
    %42 = arith.addf %15, %41 : vector<8x32xf32>
    %43 = vector.extract_strided_slice %6 {offsets = [0, 16], sizes = [8, 16], strides = [1, 1]} : vector<16x96xf32> to vector<8x16xf32>
    %44 = vector.extract_strided_slice %6 {offsets = [0, 48], sizes = [8, 16], strides = [1, 1]} : vector<16x96xf32> to vector<8x16xf32>
    %45 = vector.extract_strided_slice %6 {offsets = [0, 80], sizes = [8, 16], strides = [1, 1]} : vector<16x96xf32> to vector<8x16xf32>
    %46 = arith.truncf %43 : vector<8x16xf32> to vector<8x16xbf16>
    %47 = arith.truncf %44 : vector<8x16xf32> to vector<8x16xbf16>
    %cst_23 = arith.constant dense<0.000000e+00> : vector<8x8xf32>
    %48 = tpu.matmul %46, %47, %cst_23 {dimension_numbers = #tpu.dot_dimension_numbers<[1], [1], [0], [0], [0, 0, 1, 0], [], []>} : vector<8x16xbf16>, vector<8x16xbf16>, vector<8x8xf32> -> vector<8x8xf32>
    %cst_24 = arith.constant 2.500000e-01 : f32
    %49 = vector.broadcast %cst_24 : f32 to vector<8x8xf32>
    %50 = arith.mulf %48, %49 : vector<8x8xf32>
    %51 = vector.broadcast %14 : vector<1x8xf32> to vector<8x8xf32>
    %52 = arith.addf %50, %51 : vector<8x8xf32>
    %cst_25 = arith.constant dense<0xFF800000> : vector<8xf32>
    %53 = vector.multi_reduction <maximumf>, %52, %cst_25 [1] : vector<8x8xf32> to vector<8xf32>
    %54 = vector.shape_cast %53 : vector<8xf32> to vector<8x1xf32>
    %55 = vector.broadcast %54 : vector<8x1xf32> to vector<8x8xf32>
    %56 = arith.subf %52, %55 : vector<8x8xf32>
    %57 = math.exp %56 : vector<8x8xf32>
    %cst_26 = arith.constant dense<0.000000e+00> : vector<8xf32>
    %58 = vector.multi_reduction <add>, %57, %cst_26 [1] : vector<8x8xf32> to vector<8xf32>
    %59 = vector.shape_cast %58 : vector<8xf32> to vector<8x1xf32>
    %60 = tpu.reciprocal %59 {approx = true} : vector<8x1xf32> -> vector<8x1xf32>
    %61 = vector.broadcast %60 : vector<8x1xf32> to vector<8x8xf32>
    %62 = arith.mulf %57, %61 : vector<8x8xf32>
    %63 = arith.truncf %62 : vector<8x8xf32> to vector<8x8xbf16>
    %64 = arith.truncf %45 : vector<8x16xf32> to vector<8x16xbf16>
    %cst_27 = arith.constant dense<0.000000e+00> : vector<8x16xf32>
    %65 = tpu.matmul %63, %64, %cst_27 {dimension_numbers = #tpu.dot_dimension_numbers<[1], [0], [0], [1], [0, 0, 1, 1], [], []>} : vector<8x8xbf16>, vector<8x16xbf16>, vector<8x16xf32> -> vector<8x16xf32>
    %66 = arith.truncf %65 : vector<8x16xf32> to vector<8x16xbf16>
    %67 = vector.extract_strided_slice %8 {offsets = [16, 0], sizes = [16, 32], strides = [1, 1]} : vector<32x32xbf16> to vector<16x32xbf16>
    %cst_28 = arith.constant dense<0.000000e+00> : vector<8x32xf32>
    %68 = tpu.matmul %66, %67, %cst_28 {dimension_numbers = #tpu.dot_dimension_numbers<[1], [0], [0], [1], [0, 0, 1, 1], [], []>} : vector<8x16xbf16>, vector<16x32xbf16>, vector<8x32xf32> -> vector<8x32xf32>
    %69 = arith.addf %42, %68 : vector<8x32xf32>
    %70 = arith.addf %12, %69 : vector<8x32xf32>
    %71 = vector.broadcast %11 : vector<1x32xf32> to vector<8x32xf32>
    %72 = arith.addf %70, %71 : vector<8x32xf32>
    %cst_29 = arith.constant dense<0.000000e+00> : vector<8xf32>
    %73 = vector.multi_reduction <add>, %72, %cst_29 [1] : vector<8x32xf32> to vector<8xf32>
    %74 = vector.shape_cast %73 : vector<8xf32> to vector<8x1xf32>
    %cst_30 = arith.constant 3.200000e+01 : f32
    %75 = vector.broadcast %cst_30 : f32 to vector<8x1xf32>
    %76 = arith.divf %74, %75 : vector<8x1xf32>
    %77 = vector.broadcast %76 : vector<8x1xf32> to vector<8x32xf32>
    %78 = arith.subf %72, %77 : vector<8x32xf32>
    %79 = arith.mulf %78, %78 : vector<8x32xf32>
    %cst_31 = arith.constant dense<0.000000e+00> : vector<8xf32>
    %80 = vector.multi_reduction <add>, %79, %cst_31 [1] : vector<8x32xf32> to vector<8xf32>
    %81 = vector.shape_cast %80 : vector<8xf32> to vector<8x1xf32>
    %cst_32 = arith.constant 3.200000e+01 : f32
    %82 = vector.broadcast %cst_32 : f32 to vector<8x1xf32>
    %83 = arith.divf %81, %82 : vector<8x1xf32>
    %cst_33 = arith.constant 9.99999996E-13 : f32
    %84 = vector.broadcast %cst_33 : f32 to vector<8x1xf32>
    %85 = arith.addf %83, %84 : vector<8x1xf32>
    %86 = math.rsqrt %85 : vector<8x1xf32>
    %87 = vector.broadcast %86 : vector<8x1xf32> to vector<8x32xf32>
    %88 = arith.mulf %78, %87 : vector<8x32xf32>
    %89 = vector.broadcast %9 : vector<1x32xf32> to vector<8x32xf32>
    %90 = arith.mulf %88, %89 : vector<8x32xf32>
    %91 = vector.broadcast %10 : vector<1x32xf32> to vector<8x32xf32>
    %92 = arith.addf %90, %91 : vector<8x32xf32>
    %c0_34 = arith.constant 0 : index
    %c0_35 = arith.constant 0 : index
    %93 = vector.load %arg9[%c0_34, %c0_35] : memref<16x32xf32, #tpu.memory_space<vmem>>, vector<8x32xf32>
    tpu.vector_store %arg9[%c0_34, %c0_35], %92 {strides = array<i32>} : memref<16x32xf32, #tpu.memory_space<vmem>>, vector<8x32xf32>,
    %94 = vector.extract_strided_slice %0 {offsets = [8, 0], sizes = [8, 32], strides = [1, 1]} : vector<16x32xf32> to vector<8x32xf32>
    %95 = vector.extract_strided_slice %7 {offsets = [1, 0, 0], sizes = [1, 1, 8], strides = [1, 1, 1]} : vector<2x1x8xf32> to vector<1x1x8xf32>
    %96 = vector.shape_cast %95 : vector<1x1x8xf32> to vector<1x8xf32>
    %cst_36 = arith.constant 0.000000e+00 : f32
    %97 = vector.broadcast %cst_36 : f32 to vector<8x32xf32>
    %98 = vector.extract_strided_slice %6 {offsets = [8, 0], sizes = [8, 16], strides = [1, 1]} : vector<16x96xf32> to vector<8x16xf32>
    %99 = vector.extract_strided_slice %6 {offsets = [8, 32], sizes = [8, 16], strides = [1, 1]} : vector<16x96xf32> to vector<8x16xf32>
    %100 = vector.extract_strided_slice %6 {offsets = [8, 64], sizes = [8, 16], strides = [1, 1]} : vector<16x96xf32> to vector<8x16xf32>
    %101 = arith.truncf %98 : vector<8x16xf32> to vector<8x16xbf16>
    %102 = arith.truncf %99 : vector<8x16xf32> to vector<8x16xbf16>
    %cst_37 = arith.constant dense<0.000000e+00> : vector<8x8xf32>
    %103 = tpu.matmul %101, %102, %cst_37 {dimension_numbers = #tpu.dot_dimension_numbers<[1], [1], [0], [0], [0, 0, 1, 0], [], []>} : vector<8x16xbf16>, vector<8x16xbf16>, vector<8x8xf32> -> vector<8x8xf32>
    %cst_38 = arith.constant 2.500000e-01 : f32
    %104 = vector.broadcast %cst_38 : f32 to vector<8x8xf32>
    %105 = arith.mulf %103, %104 : vector<8x8xf32>
    %106 = vector.broadcast %96 : vector<1x8xf32> to vector<8x8xf32>
    %107 = arith.addf %105, %106 : vector<8x8xf32>
    %cst_39 = arith.constant dense<0xFF800000> : vector<8xf32>
    %108 = vector.multi_reduction <maximumf>, %107, %cst_39 [1] : vector<8x8xf32> to vector<8xf32>
    %109 = vector.shape_cast %108 : vector<8xf32> to vector<8x1xf32>
    %110 = vector.broadcast %109 : vector<8x1xf32> to vector<8x8xf32>
    %111 = arith.subf %107, %110 : vector<8x8xf32>
    %112 = math.exp %111 : vector<8x8xf32>
    %cst_40 = arith.constant dense<0.000000e+00> : vector<8xf32>
    %113 = vector.multi_reduction <add>, %112, %cst_40 [1] : vector<8x8xf32> to vector<8xf32>
    %114 = vector.shape_cast %113 : vector<8xf32> to vector<8x1xf32>
    %115 = tpu.reciprocal %114 {approx = true} : vector<8x1xf32> -> vector<8x1xf32>
    %116 = vector.broadcast %115 : vector<8x1xf32> to vector<8x8xf32>
    %117 = arith.mulf %112, %116 : vector<8x8xf32>
    %118 = arith.truncf %117 : vector<8x8xf32> to vector<8x8xbf16>
    %119 = arith.truncf %100 : vector<8x16xf32> to vector<8x16xbf16>
    %cst_41 = arith.constant dense<0.000000e+00> : vector<8x16xf32>
    %120 = tpu.matmul %118, %119, %cst_41 {dimension_numbers = #tpu.dot_dimension_numbers<[1], [0], [0], [1], [0, 0, 1, 1], [], []>} : vector<8x8xbf16>, vector<8x16xbf16>, vector<8x16xf32> -> vector<8x16xf32>
    %121 = arith.truncf %120 : vector<8x16xf32> to vector<8x16xbf16>
    %122 = vector.extract_strided_slice %8 {offsets = [0, 0], sizes = [16, 32], strides = [1, 1]} : vector<32x32xbf16> to vector<16x32xbf16>
    %cst_42 = arith.constant dense<0.000000e+00> : vector<8x32xf32>
    %123 = tpu.matmul %121, %122, %cst_42 {dimension_numbers = #tpu.dot_dimension_numbers<[1], [0], [0], [1], [0, 0, 1, 1], [], []>} : vector<8x16xbf16>, vector<16x32xbf16>, vector<8x32xf32> -> vector<8x32xf32>
    %124 = arith.addf %97, %123 : vector<8x32xf32>
    %125 = vector.extract_strided_slice %6 {offsets = [8, 16], sizes = [8, 16], strides = [1, 1]} : vector<16x96xf32> to vector<8x16xf32>
    %126 = vector.extract_strided_slice %6 {offsets = [8, 48], sizes = [8, 16], strides = [1, 1]} : vector<16x96xf32> to vector<8x16xf32>
    %127 = vector.extract_strided_slice %6 {offsets = [8, 80], sizes = [8, 16], strides = [1, 1]} : vector<16x96xf32> to vector<8x16xf32>
    %128 = arith.truncf %125 : vector<8x16xf32> to vector<8x16xbf16>
    %129 = arith.truncf %126 : vector<8x16xf32> to vector<8x16xbf16>
    %cst_43 = arith.constant dense<0.000000e+00> : vector<8x8xf32>
    %130 = tpu.matmul %128, %129, %cst_43 {dimension_numbers = #tpu.dot_dimension_numbers<[1], [1], [0], [0], [0, 0, 1, 0], [], []>} : vector<8x16xbf16>, vector<8x16xbf16>, vector<8x8xf32> -> vector<8x8xf32>
    %cst_44 = arith.constant 2.500000e-01 : f32
    %131 = vector.broadcast %cst_44 : f32 to vector<8x8xf32>
    %132 = arith.mulf %130, %131 : vector<8x8xf32>
    %133 = vector.broadcast %96 : vector<1x8xf32> to vector<8x8xf32>
    %134 = arith.addf %132, %133 : vector<8x8xf32>
    %cst_45 = arith.constant dense<0xFF800000> : vector<8xf32>
    %135 = vector.multi_reduction <maximumf>, %134, %cst_45 [1] : vector<8x8xf32> to vector<8xf32>
    %136 = vector.shape_cast %135 : vector<8xf32> to vector<8x1xf32>
    %137 = vector.broadcast %136 : vector<8x1xf32> to vector<8x8xf32>
    %138 = arith.subf %134, %137 : vector<8x8xf32>
    %139 = math.exp %138 : vector<8x8xf32>
    %cst_46 = arith.constant dense<0.000000e+00> : vector<8xf32>
    %140 = vector.multi_reduction <add>, %139, %cst_46 [1] : vector<8x8xf32> to vector<8xf32>
    %141 = vector.shape_cast %140 : vector<8xf32> to vector<8x1xf32>
    %142 = tpu.reciprocal %141 {approx = true} : vector<8x1xf32> -> vector<8x1xf32>
    %143 = vector.broadcast %142 : vector<8x1xf32> to vector<8x8xf32>
    %144 = arith.mulf %139, %143 : vector<8x8xf32>
    %145 = arith.truncf %144 : vector<8x8xf32> to vector<8x8xbf16>
    %146 = arith.truncf %127 : vector<8x16xf32> to vector<8x16xbf16>
    %cst_47 = arith.constant dense<0.000000e+00> : vector<8x16xf32>
    %147 = tpu.matmul %145, %146, %cst_47 {dimension_numbers = #tpu.dot_dimension_numbers<[1], [0], [0], [1], [0, 0, 1, 1], [], []>} : vector<8x8xbf16>, vector<8x16xbf16>, vector<8x16xf32> -> vector<8x16xf32>
    %148 = arith.truncf %147 : vector<8x16xf32> to vector<8x16xbf16>
    %149 = vector.extract_strided_slice %8 {offsets = [16, 0], sizes = [16, 32], strides = [1, 1]} : vector<32x32xbf16> to vector<16x32xbf16>
    %cst_48 = arith.constant dense<0.000000e+00> : vector<8x32xf32>
    %150 = tpu.matmul %148, %149, %cst_48 {dimension_numbers = #tpu.dot_dimension_numbers<[1], [0], [0], [1], [0, 0, 1, 1], [], []>} : vector<8x16xbf16>, vector<16x32xbf16>, vector<8x32xf32> -> vector<8x32xf32>
    %151 = arith.addf %124, %150 : vector<8x32xf32>
    %152 = arith.addf %94, %151 : vector<8x32xf32>
    %153 = vector.broadcast %11 : vector<1x32xf32> to vector<8x32xf32>
    %154 = arith.addf %152, %153 : vector<8x32xf32>
    %cst_49 = arith.constant dense<0.000000e+00> : vector<8xf32>
    %155 = vector.multi_reduction <add>, %154, %cst_49 [1] : vector<8x32xf32> to vector<8xf32>
    %156 = vector.shape_cast %155 : vector<8xf32> to vector<8x1xf32>
    %cst_50 = arith.constant 3.200000e+01 : f32
    %157 = vector.broadcast %cst_50 : f32 to vector<8x1xf32>
    %158 = arith.divf %156, %157 : vector<8x1xf32>
    %159 = vector.broadcast %158 : vector<8x1xf32> to vector<8x32xf32>
    %160 = arith.subf %154, %159 : vector<8x32xf32>
    %161 = arith.mulf %160, %160 : vector<8x32xf32>
    %cst_51 = arith.constant dense<0.000000e+00> : vector<8xf32>
    %162 = vector.multi_reduction <add>, %161, %cst_51 [1] : vector<8x32xf32> to vector<8xf32>
    %163 = vector.shape_cast %162 : vector<8xf32> to vector<8x1xf32>
    %cst_52 = arith.constant 3.200000e+01 : f32
    %164 = vector.broadcast %cst_52 : f32 to vector<8x1xf32>
    %165 = arith.divf %163, %164 : vector<8x1xf32>
    %cst_53 = arith.constant 9.99999996E-13 : f32
    %166 = vector.broadcast %cst_53 : f32 to vector<8x1xf32>
    %167 = arith.addf %165, %166 : vector<8x1xf32>
    %168 = math.rsqrt %167 : vector<8x1xf32>
    %169 = vector.broadcast %168 : vector<8x1xf32> to vector<8x32xf32>
    %170 = arith.mulf %160, %169 : vector<8x32xf32>
    %171 = vector.broadcast %9 : vector<1x32xf32> to vector<8x32xf32>
    %172 = arith.mulf %170, %171 : vector<8x32xf32>
    %173 = vector.broadcast %10 : vector<1x32xf32> to vector<8x32xf32>
    %174 = arith.addf %172, %173 : vector<8x32xf32>
    %c8 = arith.constant 8 : index
    %c0_54 = arith.constant 0 : index
    %175 = vector.load %arg9[%c8, %c0_54] : memref<16x32xf32, #tpu.memory_space<vmem>>, vector<8x32xf32>
    tpu.vector_store %arg9[%c8, %c0_54], %174 {strides = array<i32>} : memref<16x32xf32, #tpu.memory_space<vmem>>, vector<8x32xf32>,
    return
  }
  func.func @transform_0(%arg0: i32) -> (i32, i32) {
    %c0_i32 = arith.constant 0 : i32
    %c0_i32_0 = arith.constant 0 : i32
    %c0_i32_1 = arith.constant 0 : i32
    return %c0_i32, %c0_i32_0 : i32, i32
  }
  func.func @transform_1(%arg0: i32) -> (i32, i32) {
    %c0_i32 = arith.constant 0 : i32
    %c0_i32_0 = arith.constant 0 : i32
    %c0_i32_1 = arith.constant 0 : i32
    return %c0_i32, %c0_i32_0 : i32, i32
  }
  func.func @transform_2(%arg0: i32) -> (i32, i32) {
    %c0_i32 = arith.constant 0 : i32
    %c0_i32_0 = arith.constant 0 : i32
    %c0_i32_1 = arith.constant 0 : i32
    return %c0_i32, %c0_i32_0 : i32, i32
  }
  func.func @transform_3(%arg0: i32) -> (i32, i32) {
    %c0_i32 = arith.constant 0 : i32
    %c0_i32_0 = arith.constant 0 : i32
    %c0_i32_1 = arith.constant 0 : i32
    return %c0_i32, %c0_i32_0 : i32, i32
  }
  func.func @transform_4(%arg0: i32) -> (i32, i32) {
    %c0_i32 = arith.constant 0 : i32
    %c0_i32_0 = arith.constant 0 : i32
    %c0_i32_1 = arith.constant 0 : i32
    return %c0_i32, %c0_i32_0 : i32, i32
  }
  func.func @transform_5(%arg0: i32) -> (i32, i32, i32) {
    %c0_i32 = arith.constant 0 : i32
    %c0_i32_0 = arith.constant 0 : i32
    %c0_i32_1 = arith.constant 0 : i32
    %c0_i32_2 = arith.constant 0 : i32
    return %c0_i32, %c0_i32_0, %c0_i32_1 : i32, i32, i32
  }
  func.func @transform_6(%arg0: i32) -> (i32, i32) {
    %c0_i32 = arith.constant 0 : i32
    %c0_i32_0 = arith.constant 0 : i32
    %c0_i32_1 = arith.constant 0 : i32
    return %c0_i32, %c0_i32_0 : i32, i32
  }
  func.func @transform_7(%arg0: i32) -> (i32, i32) {
    %c0_i32 = arith.constant 0 : i32
    %c0_i32_0 = arith.constant 0 : i32
    %c0_i32_1 = arith.constant 0 : i32
    return %c0_i32, %c0_i32_0 : i32, i32
  }
  func.func @transform_8(%arg0: i32) -> (i32, i32) {
    %c0_i32 = arith.constant 0 : i32
    %c0_i32_0 = arith.constant 0 : i32
    %c0_i32_1 = arith.constant 0 : i32
    return %c0_i32, %c0_i32_0 : i32, i32
  }
}

</mosaic_0001>

<llo_original>
// kernel: bert_base_uncased_forward.5
$region0: #{bert_base_uncased_forward.5}
  #allocation0 [shape = 'u32[]', space=smem, size = 0x4, offset = 0x4, fixed_abs, tag = 'smem constant byte address 0x4 - core index']
  #allocation1 [shape = 'u32[72,128]{1,0:T(1,128)}', space=vmem, size = 0x9000, scoped, tag = 'internal scratch']
  %s0 = inlined_call_operand.vmem [shape: f32[16,32], index: 0, kind: input, shape index: {}]
  %s1 = inlined_call_operand.vmem [shape: f32[1,32], index: 1, kind: input, shape index: {}]
  %s2 = inlined_call_operand.vmem [shape: f32[1,32], index: 2, kind: input, shape index: {}]
  %s3 = inlined_call_operand.vmem [shape: f32[16,32], index: 3, kind: output, shape index: {}]
  %s4 = sld [smem:[#allocation0]]
  $region22: #{bert_base_uncased_forward.5} parent=0
    _
  %s6 = ssub.s32 1, %s4
  %s7 = scalar_select 0, %s6, %s4
  // Predicated region
  $region2: #{bert_base_uncased_forward.5} parent=0 // pred_check
    _
  $region3: #{bert_base_uncased_forward.5} parent=0 // pred_check_branch
    %9 = sbr.rel (0) target = $region5
  $region4: #{bert_base_uncased_forward.5} parent=0 // pred_region
    _
  $region5: #{bert_base_uncased_forward.5} parent=0 // pred_fallthru
    _
  // Predicated region
  $region6: #{bert_base_uncased_forward.5} parent=0 // pred_check
    _
  $region7: #{bert_base_uncased_forward.5} parent=0 // pred_check_branch
    %11 = sbr.rel (0) target = $region9
  $region8: #{bert_base_uncased_forward.5} parent=0 // pred_region
    _
  $region9: #{bert_base_uncased_forward.5} parent=0 // pred_fallthru
    _
  // Predicated region
  $region10: #{bert_base_uncased_forward.5} parent=0 // pred_check
    _
  $region11: #{bert_base_uncased_forward.5} parent=0 // pred_check_branch
    %13 = sbr.rel (0) target = $region13
  $region12: #{bert_base_uncased_forward.5} parent=0 // pred_region
    _
  $region13: #{bert_base_uncased_forward.5} parent=0 // pred_fallthru
    _
  %v14 = vld [vmem:[%s0] sm:$0xff]
  %v15 = vld [vmem:[%s0 + $0x8] sm:$0xff]
  %v16 = vld [vmem:[%s1] sm:$0x1]
  %v17 = vld [vmem:[%s2] sm:$0x1]
  %vm18 = vcmask 261120
  %v19 = vsel %vm18, %v14, 0.0
  %20 = vadd.xlane.f32.xlu0 %v19
  %v21 = vpop.xlane.xlu0 %20
  %v22 = vsel %vm18, %v15, 0.0
  %23 = vadd.xlane.f32.xlu0 %v22
  %v24 = vpop.xlane.xlu0 %23
  %v25 = vrcp.pop 32.0
  %v26 = vmul.f32 32.0, %v25
  %v27 = vsub.f32 1.0, %v26
  %v28 = vmul.f32 %v25, %v27
  %v29 = vadd.f32 %v25, %v28
  %vm30 = vweird.f32 %v25
  %v31 = vsel %vm30, %v25, %v29
  %v32 = vmul.f32 %v21, %v31
  %v33 = vmul.f32 %v24, %v31
  %v34 = vsub.f32 %v14, %v32
  %v35 = vsub.f32 %v15, %v33
  %v36 = vmul.f32 %v34, %v34
  %v37 = vmul.f32 %v35, %v35
  %v38 = vsel %vm18, %v36, 0.0
  %39 = vadd.xlane.f32.xlu0 %v38
  %v40 = vpop.xlane.xlu0 %39
  %v41 = vsel %vm18, %v37, 0.0
  %42 = vadd.xlane.f32.xlu0 %v41
  %v43 = vpop.xlane.xlu0 %42
  %v44 = vmul.f32 %v40, %v31
  %v45 = vmul.f32 %v43, %v31
  %v46 = vadd.f32 %v44, 1e-12
  %v47 = vadd.f32 %v45, 1e-12
  %v48 = vrsqrt.pop %v46
  %v49 = vmul.f32 %v48, %v46
  %v50 = vmul.f32 %v49, %v48
  %v51 = vmul.f32 0.5, %v50
  %v52 = vsub.f32 1.5, %v51
  %v53 = vmul.f32 %v48, %v52
  %vm54 = vweird.f32 %v46
  %vm55 = vweird.f32 %v48
  %vm56 = vmor %vm54, %vm55
  %v57 = vsel %vm56, %v48, %v53
  %v58 = vrsqrt.pop %v47
  %v59 = vmul.f32 %v58, %v47
  %v60 = vmul.f32 %v59, %v58
  %v61 = vmul.f32 0.5, %v60
  %v62 = vsub.f32 1.5, %v61
  %v63 = vmul.f32 %v58, %v62
  %vm64 = vweird.f32 %v47
  %vm65 = vweird.f32 %v58
  %vm66 = vmor %vm64, %vm65
  %v67 = vsel %vm66, %v58, %v63
  %v68 = vmul.f32 %v34, %v57
  %v69 = vmul.f32 %v35, %v67
  %v71 = vperm.slane %v16, 0
  %v73 = vmul.f32 %v68, %v71
  %v74 = vmul.f32 %v69, %v71
  %v76 = vperm.slane %v17, 0
  %v78 = vadd.f32 %v73, %v76
  %v79 = vadd.f32 %v74, %v76
  %80 = vst.msk [vmem:[%s3] sm:$0xff] %vm18, %v78
  %81 = vst.msk [vmem:[%s3 + $0x8] sm:$0xff] %vm18, %v79
  // Predicated region
  $region14: #{bert_base_uncased_forward.5} parent=0 // pred_check
    _
  $region15: #{bert_base_uncased_forward.5} parent=0 // pred_check_branch
    %83 = sbr.rel (0) target = $region17
  $region16: #{bert_base_uncased_forward.5} parent=0 // pred_region
    _
  $region17: #{bert_base_uncased_forward.5} parent=0 // pred_fallthru
    _
  // Predicated region
  $region18: #{bert_base_uncased_forward.5} parent=0 // pred_check
    _
  $region19: #{bert_base_uncased_forward.5} parent=0 // pred_check_branch
    %85 = sbr.rel (0) target = $region21
  $region20: #{bert_base_uncased_forward.5} parent=0 // pred_region
    _
  $region21: #{bert_base_uncased_forward.5} parent=0 // pred_fallthru
    _

// kernel: bert_base_uncased_forward.7
$region0: #{bert_base_uncased_forward.7}
  #allocation0 [shape = 'u32[]', space=smem, size = 0x4, offset = 0x4, fixed_abs, tag = 'smem constant byte address 0x4 - core index']
  #allocation1 [shape = 'u32[72,128]{1,0:T(1,128)}', space=vmem, size = 0x9000, scoped, tag = 'internal scratch']
  %s0 = inlined_call_operand.vmem [shape: f32[16,32], index: 0, kind: input, shape index: {}]
  %s1 = inlined_call_operand.vmem [shape: bf16[32,128], index: 1, kind: input, shape index: {}]
  %s2 = inlined_call_operand.vmem [shape: f32[1,128], index: 2, kind: input, shape index: {}]
  %s3 = inlined_call_operand.vmem [shape: bf16[128,32], index: 3, kind: input, shape index: {}]
  %s4 = inlined_call_operand.vmem [shape: f32[1,32], index: 4, kind: input, shape index: {}]
  %s5 = inlined_call_operand.vmem [shape: f32[1,32], index: 5, kind: input, shape index: {}]
  %s6 = inlined_call_operand.vmem [shape: f32[1,32], index: 6, kind: input, shape index: {}]
  %s7 = inlined_call_operand.vmem [shape: f32[16,32], index: 7, kind: output, shape index: {}]
  %s8 = sld [smem:[#allocation0]]
  $region38: #{bert_base_uncased_forward.7} parent=0
    _
  %s10 = ssub.s32 1, %s8
  %s11 = scalar_select 0, %s10, %s8
  // Predicated region
  $region2: #{bert_base_uncased_forward.7} parent=0 // pred_check
    _
  $region3: #{bert_base_uncased_forward.7} parent=0 // pred_check_branch
    %13 = sbr.rel (0) target = $region5
  $region4: #{bert_base_uncased_forward.7} parent=0 // pred_region
    _
  $region5: #{bert_base_uncased_forward.7} parent=0 // pred_fallthru
    _
  // Predicated region
  $region6: #{bert_base_uncased_forward.7} parent=0 // pred_check
    _
  $region7: #{bert_base_uncased_forward.7} parent=0 // pred_check_branch
    %15 = sbr.rel (0) target = $region9
  $region8: #{bert_base_uncased_forward.7} parent=0 // pred_region
    _
  $region9: #{bert_base_uncased_forward.7} parent=0 // pred_fallthru
    _
  // Predicated region
  $region10: #{bert_base_uncased_forward.7} parent=0 // pred_check
    _
  $region11: #{bert_base_uncased_forward.7} parent=0 // pred_check_branch
    %17 = sbr.rel (0) target = $region13
  $region12: #{bert_base_uncased_forward.7} parent=0 // pred_region
    _
  $region13: #{bert_base_uncased_forward.7} parent=0 // pred_fallthru
    _
  // Predicated region
  $region14: #{bert_base_uncased_forward.7} parent=0 // pred_check
    _
  $region15: #{bert_base_uncased_forward.7} parent=0 // pred_check_branch
    %19 = sbr.rel (0) target = $region17
  $region16: #{bert_base_uncased_forward.7} parent=0 // pred_region
    _
  $region17: #{bert_base_uncased_forward.7} parent=0 // pred_fallthru
    _
  // Predicated region
  $region18: #{bert_base_uncased_forward.7} parent=0 // pred_check
    _
  $region19: #{bert_base_uncased_forward.7} parent=0 // pred_check_branch
    %21 = sbr.rel (0) target = $region21
  $region20: #{bert_base_uncased_forward.7} parent=0 // pred_region
    _
  $region21: #{bert_base_uncased_forward.7} parent=0 // pred_fallthru
    _
  // Predicated region
  $region22: #{bert_base_uncased_forward.7} parent=0 // pred_check
    _
  $region23: #{bert_base_uncased_forward.7} parent=0 // pred_check_branch
    %23 = sbr.rel (0) target = $region25
  $region24: #{bert_base_uncased_forward.7} parent=0 // pred_region
    _
  $region25: #{bert_base_uncased_forward.7} parent=0 // pred_fallthru
    _
  // Predicated region
  $region26: #{bert_base_uncased_forward.7} parent=0 // pred_check
    _
  $region27: #{bert_base_uncased_forward.7} parent=0 // pred_check_branch
    %25 = sbr.rel (0) target = $region29
  $region28: #{bert_base_uncased_forward.7} parent=0 // pred_region
    _
  $region29: #{bert_base_uncased_forward.7} parent=0 // pred_fallthru
    _
  %v27 = vld [vmem:[%s0] sm:$0xff]
  %v28 = vld [vmem:[%s0 + $0x8] sm:$0xff]
  %v29 = vpack.c.bf16 %v28, %v27
  %v30 = vld [vmem:[%s1] sm:$0xf]
  %v31 = vld [vmem:[%s1 + $0x4] sm:$0xf]
  %v32 = vld [vmem:[%s1 + $0x8] sm:$0xf]
  %v33 = vld [vmem:[%s1 + $0xc] sm:$0xf]
  %v34 = vld [vmem:[%s2] sm:$0x1]
  %v36 = vperm.slane %v34, 0
  %v42 = vunpack.c.l.b16 %v30
  %v43 = vunpack.c.l.b16 %v31
  %v44 = vunpack.c.l.b16 %v32
  %v45 = vunpack.c.l.b16 %v33
  %v46 = vpack.c.b16 %v43, %v42
  %v47 = vpack.c.b16 %v45, %v44
  %vm50 = vcmask 261120
  %v52 = vsel %vm50, %v29, 0
  %54 = vmatpush.bf16.msra.mxu0 0
  %55 = vmatpush.bf16.msra.mxu0 0
  %56 = vmatpush.bf16.msra.mxu0 0
  %57 = vmatpush.bf16.msra.mxu0 0
  %58 = vmatpush.bf16.msra.mxu0 0
  %59 = vmatpush.bf16.msra.mxu0 0
  %60 = vmatpush.bf16.msra.mxu0 %v47
  %61 = vmatpush.bf16.msra.mxu0 %v46
  %62 = vmatmul.bf16.gmra.mxu0 %v52
  %v63 = vpop.f32.mrf.mxu0
  %v64 = vadd.f32 %v36, %v63
  %v65 = vpop.f32.mrf.mxu0
  %v66 = vadd.f32 %v36, %v65
  %67 = vdwg.mxu0
  %v68 = vmul.f32 %v64, %v64
  %v69 = vmul.f32 %v66, %v66
  %v70 = vmul.f32 %v64, %v68
  %v71 = vmul.f32 %v66, %v69
  %v72 = vmul.f32 %v70, 0.044715
  %v73 = vmul.f32 %v71, 0.044715
  %v74 = vadd.f32 %v64, %v72
  %v75 = vadd.f32 %v66, %v73
  %v76 = vmul.f32 %v74, 0.7978846
  %v77 = vmul.f32 %v75, 0.7978846
  %v78 = vtanh.pop %v76
  %v79 = vtanh.pop %v77
  %v80 = vadd.f32 %v78, 1.0
  %v81 = vadd.f32 %v79, 1.0
  %v82 = vmul.f32 %v80, 0.5
  %v83 = vmul.f32 %v81, 0.5
  %v84 = vmul.f32 %v64, %v82
  %v85 = vmul.f32 %v66, %v83
  %v86 = vpack.c.bf16 %v85, %v84
  %v87 = vld [vmem:[%s3] sm:$0xf]
  %v88 = vld [vmem:[%s3 + $0x4] sm:$0xf]
  %v89 = vld [vmem:[%s3 + $0x8] sm:$0xf]
  %v90 = vld [vmem:[%s3 + $0xc] sm:$0xf]
  %v91 = vld [vmem:[%s3 + $0x10] sm:$0xf]
  %v92 = vld [vmem:[%s3 + $0x14] sm:$0xf]
  %v93 = vld [vmem:[%s3 + $0x18] sm:$0xf]
  %v94 = vld [vmem:[%s3 + $0x1c] sm:$0xf]
  %v95 = vld [vmem:[%s3 + $0x20] sm:$0xf]
  %v96 = vld [vmem:[%s3 + $0x24] sm:$0xf]
  %v97 = vld [vmem:[%s3 + $0x28] sm:$0xf]
  %v98 = vld [vmem:[%s3 + $0x2c] sm:$0xf]
  %v99 = vld [vmem:[%s3 + $0x30] sm:$0xf]
  %v100 = vld [vmem:[%s3 + $0x34] sm:$0xf]
  %v101 = vld [vmem:[%s3 + $0x38] sm:$0xf]
  %v102 = vld [vmem:[%s3 + $0x3c] sm:$0xf]
  %v103 = vld [vmem:[%s4] sm:$0x1]
  %v105 = vperm.slane %v103, 0
  %v123 = vunpack.c.l.b16 %v87
  %v124 = vunpack.c.l.b16 %v88
  %v125 = vunpack.c.l.b16 %v89
  %v126 = vunpack.c.l.b16 %v90
  %v127 = vunpack.c.l.b16 %v91
  %v128 = vunpack.c.l.b16 %v92
  %v129 = vunpack.c.l.b16 %v93
  %v130 = vunpack.c.l.b16 %v94
  %v131 = vunpack.c.l.b16 %v95
  %v132 = vunpack.c.l.b16 %v96
  %v133 = vunpack.c.l.b16 %v97
  %v134 = vunpack.c.l.b16 %v98
  %v135 = vunpack.c.l.b16 %v99
  %v136 = vunpack.c.l.b16 %v100
  %v137 = vunpack.c.l.b16 %v101
  %v138 = vunpack.c.l.b16 %v102
  %v139 = vpack.c.b16 %v124, %v123
  %v140 = vpack.c.b16 %v126, %v125
  %v141 = vpack.c.b16 %v128, %v127
  %v142 = vpack.c.b16 %v130, %v129
  %v143 = vpack.c.b16 %v132, %v131
  %v144 = vpack.c.b16 %v134, %v133
  %v145 = vpack.c.b16 %v136, %v135
  %v146 = vpack.c.b16 %v138, %v137
  %155 = vmatpush.bf16.msra.mxu0 %v146
  %156 = vmatpush.bf16.msra.mxu0 %v145
  %157 = vmatpush.bf16.msra.mxu0 %v144
  %158 = vmatpush.bf16.msra.mxu0 %v143
  %159 = vmatpush.bf16.msra.mxu0 %v142
  %160 = vmatpush.bf16.msra.mxu0 %v141
  %161 = vmatpush.bf16.msra.mxu0 %v140
  %162 = vmatpush.bf16.msra.mxu0 %v139
  %163 = vmatmul.bf16.gmra.mxu0 %v86
  %v164 = vpop.f32.mrf.mxu0
  %v165 = vadd.f32 %v105, %v164
  %v166 = vpop.f32.mrf.mxu0
  %v167 = vadd.f32 %v105, %v166
  %168 = vdwg.mxu0
  %v169 = vadd.f32 %v27, %v165
  %v170 = vadd.f32 %v28, %v167
  %v171 = vld [vmem:[%s5] sm:$0x1]
  %v172 = vld [vmem:[%s6] sm:$0x1]
  %v173 = vsel %vm50, %v169, 0.0
  %174 = vadd.xlane.f32.xlu0 %v173
  %v175 = vpop.xlane.xlu0 %174
  %v176 = vsel %vm50, %v170, 0.0
  %177 = vadd.xlane.f32.xlu0 %v176
  %v178 = vpop.xlane.xlu0 %177
  %v179 = vrcp.pop 32.0
  %v180 = vmul.f32 32.0, %v179
  %v181 = vsub.f32 1.0, %v180
  %v182 = vmul.f32 %v179, %v181
  %v183 = vadd.f32 %v179, %v182
  %vm184 = vweird.f32 %v179
  %v185 = vsel %vm184, %v179, %v183
  %v186 = vmul.f32 %v175, %v185
  %v187 = vmul.f32 %v178, %v185
  %v188 = vsub.f32 %v169, %v186
  %v189 = vsub.f32 %v170, %v187
  %v190 = vmul.f32 %v188, %v188
  %v191 = vmul.f32 %v189, %v189
  %v192 = vsel %vm50, %v190, 0.0
  %193 = vadd.xlane.f32.xlu0 %v192
  %v194 = vpop.xlane.xlu0 %193
  %v195 = vsel %vm50, %v191, 0.0
  %196 = vadd.xlane.f32.xlu0 %v195
  %v197 = vpop.xlane.xlu0 %196
  %v198 = vmul.f32 %v194, %v185
  %v199 = vmul.f32 %v197, %v185
  %v200 = vadd.f32 %v198, 1e-12
  %v201 = vadd.f32 %v199, 1e-12
  %v202 = vrsqrt.pop %v200
  %v203 = vmul.f32 %v202, %v200
  %v204 = vmul.f32 %v203, %v202
  %v205 = vmul.f32 0.5, %v204
  %v206 = vsub.f32 1.5, %v205
  %v207 = vmul.f32 %v202, %v206
  %vm208 = vweird.f32 %v200
  %vm209 = vweird.f32 %v202
  %vm210 = vmor %vm208, %vm209
  %v211 = vsel %vm210, %v202, %v207
  %v212 = vrsqrt.pop %v201
  %v213 = vmul.f32 %v212, %v201
  %v214 = vmul.f32 %v213, %v212
  %v215 = vmul.f32 0.5, %v214
  %v216 = vsub.f32 1.5, %v215
  %v217 = vmul.f32 %v212, %v216
  %vm218 = vweird.f32 %v201
  %vm219 = vweird.f32 %v212
  %vm220 = vmor %vm218, %vm219
  %v221 = vsel %vm220, %v212, %v217
  %v222 = vmul.f32 %v188, %v211
  %v223 = vmul.f32 %v189, %v221
  %v225 = vperm.slane %v171, 0
  %v227 = vmul.f32 %v222, %v225
  %v228 = vmul.f32 %v223, %v225
  %v230 = vperm.slane %v172, 0
  %v232 = vadd.f32 %v227, %v230
  %v233 = vadd.f32 %v228, %v230
  %234 = vst.msk [vmem:[%s7] sm:$0xff] %vm50, %v232
  %235 = vst.msk [vmem:[%s7 + $0x8] sm:$0xff] %vm50, %v233
  // Predicated region
  $region30: #{bert_base_uncased_forward.7} parent=0 // pred_check
    _
  $region31: #{bert_base_uncased_forward.7} parent=0 // pred_check_branch
    %237 = sbr.rel (0) target = $region33
  $region32: #{bert_base_uncased_forward.7} parent=0 // pred_region
    _
  $region33: #{bert_base_uncased_forward.7} parent=0 // pred_fallthru
    _
  // Predicated region
  $region34: #{bert_base_uncased_forward.7} parent=0 // pred_check
    _
  $region35: #{bert_base_uncased_forward.7} parent=0 // pred_check_branch
    %239 = sbr.rel (0) target = $region37
  $region36: #{bert_base_uncased_forward.7} parent=0 // pred_region
    _
  $region37: #{bert_base_uncased_forward.7} parent=0 // pred_fallthru
    _

// kernel: bert_base_uncased_forward.6
$region0: #{bert_base_uncased_forward.6}
  #allocation0 [shape = 'u32[]', space=smem, size = 0x4, offset = 0x4, fixed_abs, tag = 'smem constant byte address 0x4 - core index']
  #allocation1 [shape = 'u32[72,128]{1,0:T(1,128)}', space=vmem, size = 0x9000, scoped, tag = 'internal scratch']
  %s0 = inlined_call_operand.vmem [shape: f32[16,32], index: 0, kind: input, shape index: {}]
  %s1 = inlined_call_operand.vmem [shape: bf16[32,96], index: 1, kind: input, shape index: {}]
  %s2 = inlined_call_operand.vmem [shape: f32[1,96], index: 2, kind: input, shape index: {}]
  %s3 = inlined_call_operand.vmem [shape: bf16[32,32], index: 3, kind: input, shape index: {}]
  %s4 = inlined_call_operand.vmem [shape: f32[1,32], index: 4, kind: input, shape index: {}]
  %s5 = inlined_call_operand.vmem [shape: f32[2,1,8], index: 5, kind: input, shape index: {}]
  %s6 = inlined_call_operand.vmem [shape: f32[1,32], index: 6, kind: input, shape index: {}]
  %s7 = inlined_call_operand.vmem [shape: f32[1,32], index: 7, kind: input, shape index: {}]
  %s8 = inlined_call_operand.vmem [shape: f32[16,32], index: 8, kind: output, shape index: {}]
  %s9 = sld [smem:[#allocation0]]
  $region42: #{bert_base_uncased_forward.6} parent=0
    _
  %s11 = ssub.s32 1, %s9
  %s12 = scalar_select 0, %s11, %s9
  // Predicated region
  $region2: #{bert_base_uncased_forward.6} parent=0 // pred_check
    _
  $region3: #{bert_base_uncased_forward.6} parent=0 // pred_check_branch
    %14 = sbr.rel (0) target = $region5
  $region4: #{bert_base_uncased_forward.6} parent=0 // pred_region
    _
  $region5: #{bert_base_uncased_forward.6} parent=0 // pred_fallthru
    _
  // Predicated region
  $region6: #{bert_base_uncased_forward.6} parent=0 // pred_check
    _
  $region7: #{bert_base_uncased_forward.6} parent=0 // pred_check_branch
    %16 = sbr.rel (0) target = $region9
  $region8: #{bert_base_uncased_forward.6} parent=0 // pred_region
    _
  $region9: #{bert_base_uncased_forward.6} parent=0 // pred_fallthru
    _
  // Predicated region
  $region10: #{bert_base_uncased_forward.6} parent=0 // pred_check
    _
  $region11: #{bert_base_uncased_forward.6} parent=0 // pred_check_branch
    %18 = sbr.rel (0) target = $region13
  $region12: #{bert_base_uncased_forward.6} parent=0 // pred_region
    _
  $region13: #{bert_base_uncased_forward.6} parent=0 // pred_fallthru
    _
  // Predicated region
  $region14: #{bert_base_uncased_forward.6} parent=0 // pred_check
    _
  $region15: #{bert_base_uncased_forward.6} parent=0 // pred_check_branch
    %20 = sbr.rel (0) target = $region17
  $region16: #{bert_base_uncased_forward.6} parent=0 // pred_region
    _
  $region17: #{bert_base_uncased_forward.6} parent=0 // pred_fallthru
    _
  // Predicated region
  $region18: #{bert_base_uncased_forward.6} parent=0 // pred_check
    _
  $region19: #{bert_base_uncased_forward.6} parent=0 // pred_check_branch
    %22 = sbr.rel (0) target = $region21
  $region20: #{bert_base_uncased_forward.6} parent=0 // pred_region
    _
  $region21: #{bert_base_uncased_forward.6} parent=0 // pred_fallthru
    _
  // Predicated region
  $region22: #{bert_base_uncased_forward.6} parent=0 // pred_check
    _
  $region23: #{bert_base_uncased_forward.6} parent=0 // pred_check_branch
    %24 = sbr.rel (0) target = $region25
  $region24: #{bert_base_uncased_forward.6} parent=0 // pred_region
    _
  $region25: #{bert_base_uncased_forward.6} parent=0 // pred_fallthru
    _
  // Predicated region
  $region26: #{bert_base_uncased_forward.6} parent=0 // pred_check
    _
  $region27: #{bert_base_uncased_forward.6} parent=0 // pred_check_branch
    %26 = sbr.rel (0) target = $region29
  $region28: #{bert_base_uncased_forward.6} parent=0 // pred_region
    _
  $region29: #{bert_base_uncased_forward.6} parent=0 // pred_fallthru
    _
  // Predicated region
  $region30: #{bert_base_uncased_forward.6} parent=0 // pred_check
    _
  $region31: #{bert_base_uncased_forward.6} parent=0 // pred_check_branch
    %28 = sbr.rel (0) target = $region33
  $region32: #{bert_base_uncased_forward.6} parent=0 // pred_region
    _
  $region33: #{bert_base_uncased_forward.6} parent=0 // pred_fallthru
    _
  %v30 = vld [vmem:[%s0] sm:$0xff]
  %v31 = vld [vmem:[%s0 + $0x8] sm:$0xff]
  %v32 = vpack.c.bf16 %v31, %v30
  %v33 = vld [vmem:[%s1] sm:$0xf]
  %v34 = vld [vmem:[%s1 + $0x4] sm:$0xf]
  %v35 = vld [vmem:[%s1 + $0x8] sm:$0xf]
  %v36 = vld [vmem:[%s1 + $0xc] sm:$0xf]
  %v37 = vld [vmem:[%s2] sm:$0x1]
  %v39 = vperm.slane %v37, 0
  %v45 = vunpack.c.l.b16 %v33
  %v46 = vunpack.c.l.b16 %v34
  %v47 = vunpack.c.l.b16 %v35
  %v48 = vunpack.c.l.b16 %v36
  %v49 = vpack.c.b16 %v46, %v45
  %v50 = vpack.c.b16 %v48, %v47
  %vm53 = vcmask 261120
  %v55 = vsel %vm53, %v32, 0
  %57 = vmatpush.bf16.msra.mxu0 0
  %58 = vmatpush.bf16.msra.mxu0 0
  %59 = vmatpush.bf16.msra.mxu0 0
  %60 = vmatpush.bf16.msra.mxu0 0
  %61 = vmatpush.bf16.msra.mxu0 0
  %62 = vmatpush.bf16.msra.mxu0 0
  %63 = vmatpush.bf16.msra.mxu0 %v50
  %64 = vmatpush.bf16.msra.mxu0 %v49
  %65 = vmatmul.bf16.gmra.mxu0 %v55
  %v66 = vpop.f32.mrf.mxu0
  %v67 = vadd.f32 %v39, %v66
  %v68 = vpop.f32.mrf.mxu0
  %v69 = vadd.f32 %v39, %v68
  %70 = vdwg.mxu0
  %v71 = vld [vmem:[%s5] sm:$0x1]
  %v72 = vld [vmem:[%s5 + $0x1] sm:$0x1]
  %v73 = vld [vmem:[%s3] sm:$0xf]
  %v74 = vld [vmem:[%s3 + $0x4] sm:$0xf]
  %v75 = vld [vmem:[%s3 + $0x8] sm:$0xf]
  %v76 = vld [vmem:[%s3 + $0xc] sm:$0xf]
  %v77 = vld [vmem:[%s6] sm:$0x1]
  %v78 = vld [vmem:[%s7] sm:$0x1]
  %v79 = vld [vmem:[%s4] sm:$0x1]
  %v80 = vpack.c.bf16 %v67, %v67
  %82 = vrot.lane.b32.xlu0 %v80, 96
  %v83 = vpop.permute.xlu0 %82
  %vm84 = vcmask 130048
  %v86 = vsel %vm84, %v80, 0
  %v89 = vsel %vm84, %v83, 0
  %91 = vmatpush.bf16.xpose.msra.mxu0 0
  %92 = vmatpush.bf16.xpose.msra.mxu0 0
  %93 = vmatpush.bf16.xpose.msra.mxu0 0
  %94 = vmatpush.bf16.xpose.msra.mxu0 0
  %95 = vmatpush.bf16.xpose.msra.mxu0 0
  %96 = vmatpush.bf16.xpose.msra.mxu0 0
  %97 = vmatpush.bf16.xpose.msra.mxu0 0
  %98 = vmatpush.bf16.xpose.msra.mxu0 %v89
  %99 = vmatmul.bf16.gmra.mxu0 %v86
  %v100 = vpop.f32.mrf.mxu0
  %v101 = vadd.f32 0.0, %v100
  %v102 = vpop.f32.mrf.mxu0
  %103 = vdwg.mxu0
  %v104 = vmul.f32 %v101, 0.25
  %v106 = vperm.slane %v71, 0
  %v108 = vadd.f32 %v104, %v106
  %vm109 = vcmask 64512
  %v110 = vsel %vm109, %v108, -inf
  %111 = vmax.xlane.f32.xlu0 %v110
  %v112 = vpop.xlane.xlu0 %111
  %v113 = vsub.f32 %v108, %v112
  %v114 = vmul.f32 %v113, 1.442695
  %v115 = vpow.pop %v114
  %v116 = vsel %vm109, %v115, 0.0
  %117 = vadd.xlane.f32.xlu0 %v116
  %v118 = vpop.xlane.xlu0 %117
  %v119 = vrcp.pop %v118
  %v120 = vmul.f32 %v115, %v119
  %v121 = vpack.c.bf16 %v120, %v120
  %122 = vrot.lane.b32.xlu0 %v80, 64
  %v123 = vpop.permute.xlu0 %122
  %v125 = vsel %vm109, %v121, 0
  %vm127 = vcmask 1043456
  %v129 = vsel %vm127, %v123, 0
  %131 = vmatpush.bf16.msra.mxu0 0
  %132 = vmatpush.bf16.msra.mxu0 0
  %133 = vmatpush.bf16.msra.mxu0 0
  %134 = vmatpush.bf16.msra.mxu0 0
  %135 = vmatpush.bf16.msra.mxu0 0
  %136 = vmatpush.bf16.msra.mxu0 0
  %137 = vmatpush.bf16.msra.mxu0 0
  %138 = vmatpush.bf16.msra.mxu0 %v129
  %139 = vmatmul.bf16.gmra.mxu0 %v125
  %v140 = vpop.f32.mrf.mxu0
  %v141 = vadd.f32 0.0, %v140
  %v142 = vpop.f32.mrf.mxu0
  %143 = vdwg.mxu0
  %v144 = vpack.c.bf16 %v141, %v141
  %145 = vrot.lane.b32.xlu0 %v80, 112
  %v146 = vpop.permute.xlu0 %145
  %147 = vrot.lane.b32.xlu0 %v80, 80
  %v148 = vpop.permute.xlu0 %147
  %v150 = vsel %vm84, %v146, 0
  %v153 = vsel %vm84, %v148, 0
  %155 = vmatpush.bf16.xpose.msra.mxu0 0
  %156 = vmatpush.bf16.xpose.msra.mxu0 0
  %157 = vmatpush.bf16.xpose.msra.mxu0 0
  %158 = vmatpush.bf16.xpose.msra.mxu0 0
  %159 = vmatpush.bf16.xpose.msra.mxu0 0
  %160 = vmatpush.bf16.xpose.msra.mxu0 0
  %161 = vmatpush.bf16.xpose.msra.mxu0 0
  %162 = vmatpush.bf16.xpose.msra.mxu0 %v153
  %163 = vmatmul.bf16.gmra.mxu0 %v150
  %v164 = vpop.f32.mrf.mxu0
  %v165 = vadd.f32 0.0, %v164
  %v166 = vpop.f32.mrf.mxu0
  %167 = vdwg.mxu0
  %v168 = vmul.f32 %v165, 0.25
  %v169 = vadd.f32 %v168, %v106
  %v170 = vsel %vm109, %v169, -inf
  %171 = vmax.xlane.f32.xlu0 %v170
  %v172 = vpop.xlane.xlu0 %171
  %v173 = vsub.f32 %v169, %v172
  %v174 = vmul.f32 %v173, 1.442695
  %v175 = vpow.pop %v174
  %v176 = vsel %vm109, %v175, 0.0
  %177 = vadd.xlane.f32.xlu0 %v176
  %v178 = vpop.xlane.xlu0 %177
  %v179 = vrcp.pop %v178
  %v180 = vmul.f32 %v175, %v179
  %v181 = vpack.c.bf16 %v180, %v180
  %182 = vrot.lane.b32.xlu0 %v80, 48
  %v183 = vpop.permute.xlu0 %182
  %v185 = vsel %vm109, %v181, 0
  %v188 = vsel %vm127, %v183, 0
  %190 = vmatpush.bf16.msra.mxu0 0
  %191 = vmatpush.bf16.msra.mxu0 0
  %192 = vmatpush.bf16.msra.mxu0 0
  %193 = vmatpush.bf16.msra.mxu0 0
  %194 = vmatpush.bf16.msra.mxu0 0
  %195 = vmatpush.bf16.msra.mxu0 0
  %196 = vmatpush.bf16.msra.mxu0 0
  %197 = vmatpush.bf16.msra.mxu0 %v188
  %198 = vmatmul.bf16.gmra.mxu0 %v185
  %v199 = vpop.f32.mrf.mxu0
  %v200 = vadd.f32 0.0, %v199
  %v201 = vpop.f32.mrf.mxu0
  %202 = vdwg.mxu0
  %v203 = vpack.c.bf16 %v200, %v200
  %v206 = vunpack.c.l.b16 %v75
  %v207 = vunpack.c.l.b16 %v76
  %v208 = vpack.c.b16 %v207, %v206
  %v211 = vsel %vm84, %v203, 0
  %213 = vmatpush.bf16.msra.mxu0 0
  %214 = vmatpush.bf16.msra.mxu0 0
  %215 = vmatpush.bf16.msra.mxu0 0
  %216 = vmatpush.bf16.msra.mxu0 0
  %217 = vmatpush.bf16.msra.mxu0 0
  %218 = vmatpush.bf16.msra.mxu0 0
  %219 = vmatpush.bf16.msra.mxu0 0
  %220 = vmatpush.bf16.msra.mxu0 %v208
  %221 = vmatmul.bf16.gmra.mxu0 %v211
  %v222 = vpop.f32.mrf.mxu0
  %v223 = vadd.f32 0.0, %v222
  %v224 = vpop.f32.mrf.mxu0
  %225 = vdwg.mxu0
  %v228 = vunpack.c.l.b16 %v73
  %v229 = vunpack.c.l.b16 %v74
  %v230 = vpack.c.b16 %v229, %v228
  %v233 = vsel %vm84, %v144, 0
  %235 = vmatpush.bf16.msra.mxu0 0
  %236 = vmatpush.bf16.msra.mxu0 0
  %237 = vmatpush.bf16.msra.mxu0 0
  %238 = vmatpush.bf16.msra.mxu0 0
  %239 = vmatpush.bf16.msra.mxu0 0
  %240 = vmatpush.bf16.msra.mxu0 0
  %241 = vmatpush.bf16.msra.mxu0 0
  %242 = vmatpush.bf16.msra.mxu0 %v230
  %243 = vmatmul.bf16.gmra.mxu0 %v233
  %v244 = vpop.f32.mrf.mxu0
  %v245 = vadd.f32 %v223, %v244
  %v246 = vpop.f32.mrf.mxu0
  %247 = vdwg.mxu0
  %v248 = vadd.f32 %v30, %v245
  %v250 = vperm.slane %v79, 0
  %v252 = vadd.f32 %v248, %v250
  %v253 = vsel %vm53, %v252, 0.0
  %254 = vadd.xlane.f32.xlu0 %v253
  %v255 = vpop.xlane.xlu0 %254
  %v256 = vrcp.pop 32.0
  %v257 = vmul.f32 32.0, %v256
  %v258 = vsub.f32 1.0, %v257
  %v259 = vmul.f32 %v256, %v258
  %v260 = vadd.f32 %v256, %v259
  %vm261 = vweird.f32 %v256
  %v262 = vsel %vm261, %v256, %v260
  %v263 = vmul.f32 %v255, %v262
  %v264 = vsub.f32 %v252, %v263
  %v265 = vmul.f32 %v264, %v264
  %v266 = vsel %vm53, %v265, 0.0
  %267 = vadd.xlane.f32.xlu0 %v266
  %v268 = vpop.xlane.xlu0 %267
  %v269 = vmul.f32 %v268, %v262
  %v270 = vadd.f32 %v269, 1e-12
  %v271 = vrsqrt.pop %v270
  %v272 = vmul.f32 %v271, %v270
  %v273 = vmul.f32 %v272, %v271
  %v274 = vmul.f32 0.5, %v273
  %v275 = vsub.f32 1.5, %v274
  %v276 = vmul.f32 %v271, %v275
  %vm277 = vweird.f32 %v270
  %vm278 = vweird.f32 %v271
  %vm279 = vmor %vm277, %vm278
  %v280 = vsel %vm279, %v271, %v276
  %v281 = vmul.f32 %v264, %v280
  %v283 = vperm.slane %v77, 0
  %v285 = vmul.f32 %v281, %v283
  %v287 = vperm.slane %v78, 0
  %v289 = vadd.f32 %v285, %v287
  %290 = vst.msk [vmem:[%s8] sm:$0xff] %vm53, %v289
  %v291 = vpack.c.bf16 %v69, %v69
  %293 = vrot.lane.b32.xlu0 %v291, 96
  %v294 = vpop.permute.xlu0 %293
  %v296 = vsel %vm84, %v291, 0
  %v299 = vsel %vm84, %v294, 0
  %301 = vmatpush.bf16.xpose.msra.mxu0 0
  %302 = vmatpush.bf16.xpose.msra.mxu0 0
  %303 = vmatpush.bf16.xpose.msra.mxu0 0
  %304 = vmatpush.bf16.xpose.msra.mxu0 0
  %305 = vmatpush.bf16.xpose.msra.mxu0 0
  %306 = vmatpush.bf16.xpose.msra.mxu0 0
  %307 = vmatpush.bf16.xpose.msra.mxu0 0
  %308 = vmatpush.bf16.xpose.msra.mxu0 %v299
  %309 = vmatmul.bf16.gmra.mxu0 %v296
  %v310 = vpop.f32.mrf.mxu0
  %v311 = vadd.f32 0.0, %v310
  %v312 = vpop.f32.mrf.mxu0
  %313 = vdwg.mxu0
  %v314 = vmul.f32 %v311, 0.25
  %v316 = vperm.slane %v72, 0
  %v318 = vadd.f32 %v314, %v316
  %v319 = vsel %vm109, %v318, -inf
  %320 = vmax.xlane.f32.xlu0 %v319
  %v321 = vpop.xlane.xlu0 %320
  %v322 = vsub.f32 %v318, %v321
  %v323 = vmul.f32 %v322, 1.442695
  %v324 = vpow.pop %v323
  %v325 = vsel %vm109, %v324, 0.0
  %326 = vadd.xlane.f32.xlu0 %v325
  %v327 = vpop.xlane.xlu0 %326
  %v328 = vrcp.pop %v327
  %v329 = vmul.f32 %v324, %v328
  %v330 = vpack.c.bf16 %v329, %v329
  %331 = vrot.lane.b32.xlu0 %v291, 64
  %v332 = vpop.permute.xlu0 %331
  %v334 = vsel %vm109, %v330, 0
  %v337 = vsel %vm127, %v332, 0
  %339 = vmatpush.bf16.msra.mxu0 0
  %340 = vmatpush.bf16.msra.mxu0 0
  %341 = vmatpush.bf16.msra.mxu0 0
  %342 = vmatpush.bf16.msra.mxu0 0
  %343 = vmatpush.bf16.msra.mxu0 0
  %344 = vmatpush.bf16.msra.mxu0 0
  %345 = vmatpush.bf16.msra.mxu0 0
  %346 = vmatpush.bf16.msra.mxu0 %v337
  %347 = vmatmul.bf16.gmra.mxu0 %v334
  %v348 = vpop.f32.mrf.mxu0
  %v349 = vadd.f32 0.0, %v348
  %v350 = vpop.f32.mrf.mxu0
  %351 = vdwg.mxu0
  %v352 = vpack.c.bf16 %v349, %v349
  %353 = vrot.lane.b32.xlu0 %v291, 112
  %v354 = vpop.permute.xlu0 %353
  %355 = vrot.lane.b32.xlu0 %v291, 80
  %v356 = vpop.permute.xlu0 %355
  %v358 = vsel %vm84, %v354, 0
  %v361 = vsel %vm84, %v356, 0
  %363 = vmatpush.bf16.xpose.msra.mxu0 0
  %364 = vmatpush.bf16.xpose.msra.mxu0 0
  %365 = vmatpush.bf16.xpose.msra.mxu0 0
  %366 = vmatpush.bf16.xpose.msra.mxu0 0
  %367 = vmatpush.bf16.xpose.msra.mxu0 0
  %368 = vmatpush.bf16.xpose.msra.mxu0 0
  %369 = vmatpush.bf16.xpose.msra.mxu0 0
  %370 = vmatpush.bf16.xpose.msra.mxu0 %v361
  %371 = vmatmul.bf16.gmra.mxu0 %v358
  %v372 = vpop.f32.mrf.mxu0
  %v373 = vadd.f32 0.0, %v372
  %v374 = vpop.f32.mrf.mxu0
  %375 = vdwg.mxu0
  %v376 = vmul.f32 %v373, 0.25
  %v377 = vadd.f32 %v376, %v316
  %v378 = vsel %vm109, %v377, -inf
  %379 = vmax.xlane.f32.xlu0 %v378
  %v380 = vpop.xlane.xlu0 %379
  %v381 = vsub.f32 %v377, %v380
  %v382 = vmul.f32 %v381, 1.442695
  %v383 = vpow.pop %v382
  %v384 = vsel %vm109, %v383, 0.0
  %385 = vadd.xlane.f32.xlu0 %v384
  %v386 = vpop.xlane.xlu0 %385
  %v387 = vrcp.pop %v386
  %v388 = vmul.f32 %v383, %v387
  %v389 = vpack.c.bf16 %v388, %v388
  %390 = vrot.lane.b32.xlu0 %v291, 48
  %v391 = vpop.permute.xlu0 %390
  %v393 = vsel %vm109, %v389, 0
  %v396 = vsel %vm127, %v391, 0
  %398 = vmatpush.bf16.msra.mxu0 0
  %399 = vmatpush.bf16.msra.mxu0 0
  %400 = vmatpush.bf16.msra.mxu0 0
  %401 = vmatpush.bf16.msra.mxu0 0
  %402 = vmatpush.bf16.msra.mxu0 0
  %403 = vmatpush.bf16.msra.mxu0 0
  %404 = vmatpush.bf16.msra.mxu0 0
  %405 = vmatpush.bf16.msra.mxu0 %v396
  %406 = vmatmul.bf16.gmra.mxu0 %v393
  %v407 = vpop.f32.mrf.mxu0
  %v408 = vadd.f32 0.0, %v407
  %v409 = vpop.f32.mrf.mxu0
  %410 = vdwg.mxu0
  %v411 = vpack.c.bf16 %v408, %v408
  %v413 = vsel %vm84, %v411, 0
  %415 = vmatpush.bf16.msra.mxu0 0
  %416 = vmatpush.bf16.msra.mxu0 0
  %417 = vmatpush.bf16.msra.mxu0 0
  %418 = vmatpush.bf16.msra.mxu0 0
  %419 = vmatpush.bf16.msra.mxu0 0
  %420 = vmatpush.bf16.msra.mxu0 0
  %421 = vmatpush.bf16.msra.mxu0 0
  %422 = vmatpush.bf16.msra.mxu0 %v208
  %423 = vmatmul.bf16.gmra.mxu0 %v413
  %v424 = vpop.f32.mrf.mxu0
  %v425 = vadd.f32 0.0, %v424
  %v426 = vpop.f32.mrf.mxu0
  %427 = vdwg.mxu0
  %v429 = vsel %vm84, %v352, 0
  %431 = vmatpush.bf16.msra.mxu0 0
  %432 = vmatpush.bf16.msra.mxu0 0
  %433 = vmatpush.bf16.msra.mxu0 0
  %434 = vmatpush.bf16.msra.mxu0 0
  %435 = vmatpush.bf16.msra.mxu0 0
  %436 = vmatpush.bf16.msra.mxu0 0
  %437 = vmatpush.bf16.msra.mxu0 0
  %438 = vmatpush.bf16.msra.mxu0 %v230
  %439 = vmatmul.bf16.gmra.mxu0 %v429
  %v440 = vpop.f32.mrf.mxu0
  %v441 = vadd.f32 %v425, %v440
  %v442 = vpop.f32.mrf.mxu0
  %443 = vdwg.mxu0
  %v444 = vadd.f32 %v31, %v441
  %v445 = vadd.f32 %v444, %v250
  %v446 = vsel %vm53, %v445, 0.0
  %447 = vadd.xlane.f32.xlu0 %v446
  %v448 = vpop.xlane.xlu0 %447
  %v449 = vmul.f32 %v448, %v262
  %v450 = vsub.f32 %v445, %v449
  %v451 = vmul.f32 %v450, %v450
  %v452 = vsel %vm53, %v451, 0.0
  %453 = vadd.xlane.f32.xlu0 %v452
  %v454 = vpop.xlane.xlu0 %453
  %v455 = vmul.f32 %v454, %v262
  %v456 = vadd.f32 %v455, 1e-12
  %v457 = vrsqrt.pop %v456
  %v458 = vmul.f32 %v457, %v456
  %v459 = vmul.f32 %v458, %v457
  %v460 = vmul.f32 0.5, %v459
  %v461 = vsub.f32 1.5, %v460
  %v462 = vmul.f32 %v457, %v461
  %vm463 = vweird.f32 %v456
  %vm464 = vweird.f32 %v457
  %vm465 = vmor %vm463, %vm464
  %v466 = vsel %vm465, %v457, %v462
  %v467 = vmul.f32 %v450, %v466
  %v468 = vmul.f32 %v467, %v283
  %v469 = vadd.f32 %v468, %v287
  %470 = vst.msk [vmem:[%s8 + $0x8] sm:$0xff] %vm53, %v469
  // Predicated region
  $region34: #{bert_base_uncased_forward.6} parent=0 // pred_check
    _
  $region35: #{bert_base_uncased_forward.6} parent=0 // pred_check_branch
    %472 = sbr.rel (0) target = $region37
  $region36: #{bert_base_uncased_forward.6} parent=0 // pred_region
    _
  $region37: #{bert_base_uncased_forward.6} parent=0 // pred_fallthru
    _
  // Predicated region
  $region38: #{bert_base_uncased_forward.6} parent=0 // pred_check
    _
  $region39: #{bert_base_uncased_forward.6} parent=0 // pred_check_branch
    %474 = sbr.rel (0) target = $region41
  $region40: #{bert_base_uncased_forward.6} parent=0 // pred_region
    _
  $region41: #{bert_base_uncased_forward.6} parent=0 // pred_fallthru
    _

</llo_original>
